<compile_context>
chip_gen: v7x
topology: tpu7x:2x2x1
jax: 0.10.0
libtpu: 0.0.40
codegen_flags: <defaults>
</compile_context>

<pallas_src>
import functools

import jax
import jax.numpy as jnp
from jax.experimental import pallas as pl
from jax.experimental.pallas import tpu as pltpu

# Fixed architecture of the reference module (default ctor args).
D_IN, H1, H2, H3, D_OUT = 1, 30, 20, 10, 1
# TODO(synk): only the default 'relu' activation is implemented (the 'tanh'/'elu'
# branches of the PyTorch ctor are not exercised here).

CHUNK = 256          # lanes per inner compute chunk (multiple of 128)

# Packed parameter slab, (SLAB_ROWS, SLAB_COLS) f32, VMEM-resident via a constant
# index_map.  Rank-1 params are lane-replicated across all SLAB_COLS columns so the
# kernel reads them as dense full-lane rows (no lane-broadcast work).  Row starts are
# 8-aligned (sublane groups).
SLAB_ROWS, SLAB_COLS = 136, CHUNK
ROW_W1 = 0           # w1  (30, CHUNK)  lane-replicated
ROW_B1 = 32          # b1  (30, CHUNK)
ROW_B2 = 64          # b2  (20, CHUNK)
ROW_B3 = 88          # b3  (10, CHUNK)
ROW_B4 = 104         # b4  ( 1, CHUNK)
ROW_MAT = 112        # dense weight matrices (PyTorch (out, in) orientation)
COL_W2 = 0           # W2  (20, 30)
COL_W3 = 128         # W3  (10, 20)
COL_W4 = 160         # W4  ( 1, 10)


def pack_params(params):
    """Pack PyTorch-orientation params [(W(out,in), b(out,)) x 4] into one slab."""
    (w1, b1), (w2, b2), (w3, b3), (w4, b4) = params

    def rep(v):  # (n,) -> (n, SLAB_COLS) lane-replicated f32
        v = jnp.asarray(v, jnp.float32).reshape(-1)
        return jnp.broadcast_to(v[:, None], (v.shape[0], SLAB_COLS))

    slab = jnp.zeros((SLAB_ROWS, SLAB_COLS), jnp.float32)
    slab = slab.at[ROW_W1:ROW_W1 + H1, :].set(rep(w1[:, 0]))
    slab = slab.at[ROW_B1:ROW_B1 + H1, :].set(rep(b1))
    slab = slab.at[ROW_B2:ROW_B2 + H2, :].set(rep(b2))
    slab = slab.at[ROW_B3:ROW_B3 + H3, :].set(rep(b3))
    slab = slab.at[ROW_B4:ROW_B4 + D_OUT, :].set(rep(b4))
    slab = slab.at[ROW_MAT:ROW_MAT + H2, COL_W2:COL_W2 + H1].set(w2.astype(jnp.float32))
    slab = slab.at[ROW_MAT:ROW_MAT + H3, COL_W3:COL_W3 + H2].set(w3.astype(jnp.float32))
    slab = slab.at[ROW_MAT:ROW_MAT + D_OUT, COL_W4:COL_W4 + H3].set(w4.astype(jnp.float32))
    return slab


def _mlp_kernel(x_ref, p_ref, o_ref, *, num_chunks, matmul_dtype):
    """One batch tile, batch on the lane axis, processed in 256-lane chunks.

    x_ref : (1, batch_tile)   o_ref : (1, batch_tile)
    p_ref : (SLAB_ROWS, SLAB_COLS) packed parameter slab
    """
    # Small dense weight matrices: loaded & cast to the MXU input dtype once per grid
    # step (loop-invariant, only a handful of vregs).
    w2 = p_ref[ROW_MAT:ROW_MAT + H2, COL_W2:COL_W2 + H1].astype(matmul_dtype)      # (20, 30)
    w3 = p_ref[ROW_MAT:ROW_MAT + H3, COL_W3:COL_W3 + H2].astype(matmul_dtype)      # (10, 20)
    w4 = p_ref[ROW_MAT:ROW_MAT + D_OUT, COL_W4:COL_W4 + H3].astype(matmul_dtype)   # ( 1, 10)

    def chunk(c, carry):
        c0 = pl.multiple_of(c * CHUNK, CHUNK)            # aligned, unmasked vld/vst
        x = x_ref[:, pl.ds(c0, CHUNK)]                   # (1, CHUNK)

        # Lane-replicated rank-1 params -> plain dense vlds (vld slot has slack).
        w1 = p_ref[ROW_W1:ROW_W1 + H1, :]                # (30, CHUNK)
        b1 = p_ref[ROW_B1:ROW_B1 + H1, :]                # (30, CHUNK)
        b2 = p_ref[ROW_B2:ROW_B2 + H2, :]                # (20, CHUNK)
        b3 = p_ref[ROW_B3:ROW_B3 + H3, :]                # (10, CHUNK)
        b4 = p_ref[ROW_B4:ROW_B4 + D_OUT, :]             # ( 1, CHUNK)

        # Layer 1: Linear(1, 30) + ReLU.  K=1 -> pure VPU broadcast-FMA, off the MXU.
        # TODO(synk): a stride-0 sublane-broadcast load of x would move the
        # (1,C)->(30,C) fan-out onto the load slot; kept implicit for lowering robustness.
        h = jnp.maximum(w1 * x + b1, 0.0)                # (30, CHUNK) f32

        # Layer 2: Linear(30, 20) + ReLU  (MXU, f32 accumulation).
        h = jnp.maximum(
            jnp.dot(w2, h.astype(matmul_dtype),
                    preferred_element_type=jnp.float32) + b2, 0.0)    # (20, CHUNK)

        # Layer 3: Linear(20, 10) + ReLU  (MXU).
        h = jnp.maximum(
            jnp.dot(w3, h.astype(matmul_dtype),
                    preferred_element_type=jnp.float32) + b3, 0.0)    # (10, CHUNK)

        # Layer 4: Linear(10, 1)  (MXU; keeps the cross-sublane reduce off the XLU).
        out = jnp.dot(w4, h.astype(matmul_dtype),
                      preferred_element_type=jnp.float32) + b4        # (1, CHUNK)
        o_ref[:, pl.ds(c0, CHUNK)] = out.astype(o_ref.dtype)
        return carry

    # Unrolled so the LLO scheduler can co-issue MXU pushes, VPU epilogue and stores
    # across neighbouring chunks.
    jax.lax.fori_loop(0, num_chunks, chunk, 0, unroll=min(8, num_chunks))


def _round_up(n, m):
    return ((n + m - 1) // m) * m


def deep_option_pricing_forward(x, packed_params, *, batch_tile=8192,
                                matmul_dtype=jnp.bfloat16):
    """Pallas forward for DeepOptionPricingNN.

    x             : (B, 1) float32
    packed_params : (SLAB_ROWS, SLAB_COLS) float32 slab from pack_params()
    batch_tile    : lane-axis DMA block (multiple of CHUNK).  Bigger tiles -> fewer
                    grid steps (less per-step overhead); the inner chunk loop keeps
                    vreg pressure bounded regardless.  On v7x pick it so the grid is
                    an even count >= 2 (two TensorCores); on v5e/v6e a single grid
                    step is ideal for small B (the tile auto-shrinks to fit B).
                    VMEM footprint is tiny (<1 MiB) on every generation.
    matmul_dtype  : MXU input dtype for layers 2-4 (bfloat16 default for ~3x fewer
                    MXU passes; pass jnp.float32 for the module's exact numerics).
    """
    B, in_dim = x.shape
    assert in_dim == D_IN, "this kernel is specialized to input_dim=1"
    assert batch_tile % CHUNK == 0, f"batch_tile must be a multiple of {CHUNK}"

    # Shrink the tile for small batches so the grid stays short on single-TC chips.
    tile = min(batch_tile, _round_up(B, CHUNK))
    b_pad = _round_up(B, tile)
    num_chunks = tile // CHUNK

    # Batch lives on the lane axis; pad to a tile multiple (masked off afterwards).
    x_row = x.reshape(1, B)
    if b_pad != B:
        x_row = jnp.pad(x_row, ((0, 0), (0, b_pad - B)))

    grid = (b_pad // tile,)
    flops = 2 * b_pad * (D_IN * H1 + H1 * H2 + H2 * H3 + H3 * D_OUT)
    bytes_accessed = 4 * b_pad * 2 + 4 * SLAB_ROWS * SLAB_COLS

    kernel = functools.partial(_mlp_kernel, num_chunks=num_chunks,
                               matmul_dtype=matmul_dtype)

    out_row = pl.pallas_call(
        kernel,
        out_shape=jax.ShapeDtypeStruct((1, b_pad), jnp.float32),
        grid_spec=pltpu.PrefetchScalarGridSpec(
            num_scalar_prefetch=0,
            grid=grid,
            in_specs=[
                pl.BlockSpec((1, tile), lambda i: (0, i)),
                pl.BlockSpec((SLAB_ROWS, SLAB_COLS), lambda i: (0, 0)),
            ],
            out_specs=pl.BlockSpec((1, tile), lambda i: (0, i)),
        ),
        compiler_params=pltpu.CompilerParams(
            dimension_semantics=("parallel",)),
        cost_estimate=pl.CostEstimate(
            flops=flops, transcendentals=0, bytes_accessed=bytes_accessed),
    )(x_row, packed_params)

    return out_row[:, :B].reshape(B, D_OUT)


def init_params(key, input_dim=D_IN, hidden_dims=(H1, H2, H3), output_dim=D_OUT):
    """PyTorch-orientation init mimicking nn.Linear's U(-1/sqrt(fan_in), 1/sqrt(fan_in))."""
    dims = [input_dim, *hidden_dims, output_dim]
    params = []
    for i in range(len(dims) - 1):
        fan_in, fan_out = dims[i], dims[i + 1]
        key, kw, kb = jax.random.split(key, 3)
        bound = float(fan_in) ** -0.5
        w = jax.random.uniform(kw, (fan_out, fan_in), jnp.float32, -bound, bound)
        b = jax.random.uniform(kb, (fan_out,), jnp.float32, -bound, bound)
        params.append((w, b))
    return params


def reference_forward(x, params, matmul_dtype=jnp.float32):
    """Plain-JAX mirror of the PyTorch forward (x @ W.T + b, ReLU between).

    matmul_dtype=float32 reproduces the module's f32 semantics; bfloat16 applies the
    same MXU-input casts as the kernel's default path (matched comparison).
    """
    (w1, b1), *rest = params
    h = jnp.maximum(x * w1.T + b1, 0.0)      # Linear(1, 30): K=1 -> elementwise
    for i, (w, b) in enumerate(rest):
        z = jnp.dot(h.astype(matmul_dtype), w.T.astype(matmul_dtype),
                    precision=jax.lax.Precision.HIGHEST,
                    preferred_element_type=jnp.float32) + b
        h = jnp.maximum(z, 0.0) if i < len(rest) - 1 else z
    return h


if __name__ == "__main__":
    key = jax.random.PRNGKey(0)
    key, kx = jax.random.split(key)

    # 4096 samples of a single feature (e.g. stock price S).  batch_tile=2048 ->
    # grid=2 ("parallel"): both v7x TensorCores get a tile, while v5e/v6e pay only
    # two grid-step overheads; each tile runs 8 unrolled 256-lane compute chunks.
    B = 4096
    x = jax.random.normal(kx, (B, D_IN), jnp.float32)

    params = init_params(jax.random.PRNGKey(0))
    packed = pack_params(params)

    # Default (bfloat16 MXU-input) path, checked against a reference that applies the
    # same bf16 casts; tolerance covers bf16 rounding-boundary flips caused by the
    # differing f32 accumulation order between the kernel and XLA.
    fwd_bf16 = jax.jit(functools.partial(
        deep_option_pricing_forward, batch_tile=2048))
    y_bf16 = fwd_bf16(x, packed)
    jax.block_until_ready(y_bf16)
    ref_bf16 = reference_forward(x, params, matmul_dtype=jnp.bfloat16)
    assert y_bf16.shape == (B, D_OUT)
    assert jnp.allclose(y_bf16, ref_bf16, atol=1e-2, rtol=1e-2), \
        "bf16 path mismatch vs. matched reference"

    # Exact-f32 path (the PyTorch module's numerics).
    fwd_f32 = jax.jit(functools.partial(
        deep_option_pricing_forward, batch_tile=2048, matmul_dtype=jnp.float32))
    y_f32 = fwd_f32(x, packed)
    jax.block_until_ready(y_f32)
    ref_f32 = reference_forward(x, params)
    assert y_f32.shape == (B, D_OUT)
    assert jnp.allclose(y_f32, ref_f32, atol=1e-4, rtol=1e-4), \
        "f32 path mismatch vs. reference"

    print("KERNEL_OK")
</pallas_src>

<mosaic_0001>
module attributes {stable_mosaic.version = 11 : i64} {
  func.func @_mlp_kernel(%arg0: i32, %arg1: memref<1x2048xf32, #tpu.memory_space<vmem>>, %arg2: memref<136x256xf32, #tpu.memory_space<vmem>>, %arg3: memref<1x2048xf32, #tpu.memory_space<vmem>>) attributes {dimension_semantics = [#tpu.dimension_semantics<parallel>], iteration_bounds = array<i64: 2>, scalar_prefetch = 0 : i64, scratch_operands = 0 : i64, tpu.core_type = #tpu.core_type<tc>, window_params = [{transform_indices = @transform_0, window_bounds = array<i64: 1, 2048>}, {pipeline_mode = #tpu.pipeline_mode<synchronous>, transform_indices = @transform_1, window_bounds = array<i64: 136, 256>}, {transform_indices = @transform_2, window_bounds = array<i64: 1, 2048>}]} {
    %c112 = arith.constant 112 : index
    %c0 = arith.constant 0 : index
    %0 = vector.load %arg2[%c112, %c0] : memref<136x256xf32, #tpu.memory_space<vmem>>, vector<20x30xf32>
    %1 = arith.truncf %0 : vector<20x30xf32> to vector<20x30xbf16>
    %c112_0 = arith.constant 112 : index
    %c128 = arith.constant 128 : index
    %2 = vector.load %arg2[%c112_0, %c128] : memref<136x256xf32, #tpu.memory_space<vmem>>, vector<10x20xf32>
    %3 = arith.truncf %2 : vector<10x20xf32> to vector<10x20xbf16>
    %c112_1 = arith.constant 112 : index
    %c160 = arith.constant 160 : index
    %4 = vector.load %arg2[%c112_1, %c160] : memref<136x256xf32, #tpu.memory_space<vmem>>, vector<1x10xf32>
    %5 = arith.truncf %4 : vector<1x10xf32> to vector<1x10xbf16>
    %c0_i32 = arith.constant 0 : i32
    %c256_i32 = arith.constant 256 : i32
    %6 = arith.muli %c0_i32, %c256_i32 : i32
    %7 = tpu.assume_multiple %6, 256 : i32
    %c0_2 = arith.constant 0 : index
    %8 = arith.index_cast %7 : i32 to index
    %9 = vector.load %arg1[%c0_2, %8] : memref<1x2048xf32, #tpu.memory_space<vmem>>, vector<1x256xf32>
    %c0_3 = arith.constant 0 : index
    %c0_4 = arith.constant 0 : index
    %10 = vector.load %arg2[%c0_3, %c0_4] : memref<136x256xf32, #tpu.memory_space<vmem>>, vector<30x256xf32>
    %c32 = arith.constant 32 : index
    %c0_5 = arith.constant 0 : index
    %11 = vector.load %arg2[%c32, %c0_5] : memref<136x256xf32, #tpu.memory_space<vmem>>, vector<30x256xf32>
    %c64 = arith.constant 64 : index
    %c0_6 = arith.constant 0 : index
    %12 = vector.load %arg2[%c64, %c0_6] : memref<136x256xf32, #tpu.memory_space<vmem>>, vector<20x256xf32>
    %c88 = arith.constant 88 : index
    %c0_7 = arith.constant 0 : index
    %13 = vector.load %arg2[%c88, %c0_7] : memref<136x256xf32, #tpu.memory_space<vmem>>, vector<10x256xf32>
    %c104 = arith.constant 104 : index
    %c0_8 = arith.constant 0 : index
    %14 = vector.load %arg2[%c104, %c0_8] : memref<136x256xf32, #tpu.memory_space<vmem>>, vector<1x256xf32>
    %15 = vector.broadcast %9 : vector<1x256xf32> to vector<30x256xf32>
    %16 = arith.mulf %10, %15 : vector<30x256xf32>
    %17 = arith.addf %16, %11 : vector<30x256xf32>
    %cst = arith.constant 0.000000e+00 : f32
    %18 = vector.broadcast %cst : f32 to vector<30x256xf32>
    %19 = arith.maximumf %17, %18 : vector<30x256xf32>
    %20 = arith.truncf %19 : vector<30x256xf32> to vector<30x256xbf16>
    %cst_9 = arith.constant dense<0.000000e+00> : vector<20x256xf32>
    %21 = tpu.matmul %1, %20, %cst_9 {dimension_numbers = #tpu.dot_dimension_numbers<[1], [0], [0], [1], [0, 0, 1, 1], [], []>} : vector<20x30xbf16>, vector<30x256xbf16>, vector<20x256xf32> -> vector<20x256xf32>
    %22 = arith.addf %21, %12 : vector<20x256xf32>
    %cst_10 = arith.constant 0.000000e+00 : f32
    %23 = vector.broadcast %cst_10 : f32 to vector<20x256xf32>
    %24 = arith.maximumf %22, %23 : vector<20x256xf32>
    %25 = arith.truncf %24 : vector<20x256xf32> to vector<20x256xbf16>
    %cst_11 = arith.constant dense<0.000000e+00> : vector<10x256xf32>
    %26 = tpu.matmul %3, %25, %cst_11 {dimension_numbers = #tpu.dot_dimension_numbers<[1], [0], [0], [1], [0, 0, 1, 1], [], []>} : vector<10x20xbf16>, vector<20x256xbf16>, vector<10x256xf32> -> vector<10x256xf32>
    %27 = arith.addf %26, %13 : vector<10x256xf32>
    %cst_12 = arith.constant 0.000000e+00 : f32
    %28 = vector.broadcast %cst_12 : f32 to vector<10x256xf32>
    %29 = arith.maximumf %27, %28 : vector<10x256xf32>
    %30 = arith.truncf %29 : vector<10x256xf32> to vector<10x256xbf16>
    %cst_13 = arith.constant dense<0.000000e+00> : vector<1x256xf32>
    %31 = tpu.matmul %5, %30, %cst_13 {dimension_numbers = #tpu.dot_dimension_numbers<[1], [0], [0], [1], [0, 0, 1, 1], [], []>} : vector<1x10xbf16>, vector<10x256xbf16>, vector<1x256xf32> -> vector<1x256xf32>
    %32 = arith.addf %31, %14 : vector<1x256xf32>
    %c0_14 = arith.constant 0 : index
    %33 = arith.index_cast %7 : i32 to index
    %34 = vector.load %arg3[%c0_14, %33] : memref<1x2048xf32, #tpu.memory_space<vmem>>, vector<1x256xf32>
    tpu.vector_store %arg3[%c0_14, %33], %32 {strides = array<i32>} : memref<1x2048xf32, #tpu.memory_space<vmem>>, vector<1x256xf32>,
    %c1_i32 = arith.constant 1 : i32
    %c256_i32_15 = arith.constant 256 : i32
    %35 = arith.muli %c1_i32, %c256_i32_15 : i32
    %36 = tpu.assume_multiple %35, 256 : i32
    %c0_16 = arith.constant 0 : index
    %37 = arith.index_cast %36 : i32 to index
    %38 = vector.load %arg1[%c0_16, %37] : memref<1x2048xf32, #tpu.memory_space<vmem>>, vector<1x256xf32>
    %c0_17 = arith.constant 0 : index
    %c0_18 = arith.constant 0 : index
    %39 = vector.load %arg2[%c0_17, %c0_18] : memref<136x256xf32, #tpu.memory_space<vmem>>, vector<30x256xf32>
    %c32_19 = arith.constant 32 : index
    %c0_20 = arith.constant 0 : index
    %40 = vector.load %arg2[%c32_19, %c0_20] : memref<136x256xf32, #tpu.memory_space<vmem>>, vector<30x256xf32>
    %c64_21 = arith.constant 64 : index
    %c0_22 = arith.constant 0 : index
    %41 = vector.load %arg2[%c64_21, %c0_22] : memref<136x256xf32, #tpu.memory_space<vmem>>, vector<20x256xf32>
    %c88_23 = arith.constant 88 : index
    %c0_24 = arith.constant 0 : index
    %42 = vector.load %arg2[%c88_23, %c0_24] : memref<136x256xf32, #tpu.memory_space<vmem>>, vector<10x256xf32>
    %c104_25 = arith.constant 104 : index
    %c0_26 = arith.constant 0 : index
    %43 = vector.load %arg2[%c104_25, %c0_26] : memref<136x256xf32, #tpu.memory_space<vmem>>, vector<1x256xf32>
    %44 = vector.broadcast %38 : vector<1x256xf32> to vector<30x256xf32>
    %45 = arith.mulf %39, %44 : vector<30x256xf32>
    %46 = arith.addf %45, %40 : vector<30x256xf32>
    %cst_27 = arith.constant 0.000000e+00 : f32
    %47 = vector.broadcast %cst_27 : f32 to vector<30x256xf32>
    %48 = arith.maximumf %46, %47 : vector<30x256xf32>
    %49 = arith.truncf %48 : vector<30x256xf32> to vector<30x256xbf16>
    %cst_28 = arith.constant dense<0.000000e+00> : vector<20x256xf32>
    %50 = tpu.matmul %1, %49, %cst_28 {dimension_numbers = #tpu.dot_dimension_numbers<[1], [0], [0], [1], [0, 0, 1, 1], [], []>} : vector<20x30xbf16>, vector<30x256xbf16>, vector<20x256xf32> -> vector<20x256xf32>
    %51 = arith.addf %50, %41 : vector<20x256xf32>
    %cst_29 = arith.constant 0.000000e+00 : f32
    %52 = vector.broadcast %cst_29 : f32 to vector<20x256xf32>
    %53 = arith.maximumf %51, %52 : vector<20x256xf32>
    %54 = arith.truncf %53 : vector<20x256xf32> to vector<20x256xbf16>
    %cst_30 = arith.constant dense<0.000000e+00> : vector<10x256xf32>
    %55 = tpu.matmul %3, %54, %cst_30 {dimension_numbers = #tpu.dot_dimension_numbers<[1], [0], [0], [1], [0, 0, 1, 1], [], []>} : vector<10x20xbf16>, vector<20x256xbf16>, vector<10x256xf32> -> vector<10x256xf32>
    %56 = arith.addf %55, %42 : vector<10x256xf32>
    %cst_31 = arith.constant 0.000000e+00 : f32
    %57 = vector.broadcast %cst_31 : f32 to vector<10x256xf32>
    %58 = arith.maximumf %56, %57 : vector<10x256xf32>
    %59 = arith.truncf %58 : vector<10x256xf32> to vector<10x256xbf16>
    %cst_32 = arith.constant dense<0.000000e+00> : vector<1x256xf32>
    %60 = tpu.matmul %5, %59, %cst_32 {dimension_numbers = #tpu.dot_dimension_numbers<[1], [0], [0], [1], [0, 0, 1, 1], [], []>} : vector<1x10xbf16>, vector<10x256xbf16>, vector<1x256xf32> -> vector<1x256xf32>
    %61 = arith.addf %60, %43 : vector<1x256xf32>
    %c0_33 = arith.constant 0 : index
    %62 = arith.index_cast %36 : i32 to index
    %63 = vector.load %arg3[%c0_33, %62] : memref<1x2048xf32, #tpu.memory_space<vmem>>, vector<1x256xf32>
    tpu.vector_store %arg3[%c0_33, %62], %61 {strides = array<i32>} : memref<1x2048xf32, #tpu.memory_space<vmem>>, vector<1x256xf32>,
    %c2_i32 = arith.constant 2 : i32
    %c256_i32_34 = arith.constant 256 : i32
    %64 = arith.muli %c2_i32, %c256_i32_34 : i32
    %65 = tpu.assume_multiple %64, 256 : i32
    %c0_35 = arith.constant 0 : index
    %66 = arith.index_cast %65 : i32 to index
    %67 = vector.load %arg1[%c0_35, %66] : memref<1x2048xf32, #tpu.memory_space<vmem>>, vector<1x256xf32>
    %c0_36 = arith.constant 0 : index
    %c0_37 = arith.constant 0 : index
    %68 = vector.load %arg2[%c0_36, %c0_37] : memref<136x256xf32, #tpu.memory_space<vmem>>, vector<30x256xf32>
    %c32_38 = arith.constant 32 : index
    %c0_39 = arith.constant 0 : index
    %69 = vector.load %arg2[%c32_38, %c0_39] : memref<136x256xf32, #tpu.memory_space<vmem>>, vector<30x256xf32>
    %c64_40 = arith.constant 64 : index
    %c0_41 = arith.constant 0 : index
    %70 = vector.load %arg2[%c64_40, %c0_41] : memref<136x256xf32, #tpu.memory_space<vmem>>, vector<20x256xf32>
    %c88_42 = arith.constant 88 : index
    %c0_43 = arith.constant 0 : index
    %71 = vector.load %arg2[%c88_42, %c0_43] : memref<136x256xf32, #tpu.memory_space<vmem>>, vector<10x256xf32>
    %c104_44 = arith.constant 104 : index
    %c0_45 = arith.constant 0 : index
    %72 = vector.load %arg2[%c104_44, %c0_45] : memref<136x256xf32, #tpu.memory_space<vmem>>, vector<1x256xf32>
    %73 = vector.broadcast %67 : vector<1x256xf32> to vector<30x256xf32>
    %74 = arith.mulf %68, %73 : vector<30x256xf32>
    %75 = arith.addf %74, %69 : vector<30x256xf32>
    %cst_46 = arith.constant 0.000000e+00 : f32
    %76 = vector.broadcast %cst_46 : f32 to vector<30x256xf32>
    %77 = arith.maximumf %75, %76 : vector<30x256xf32>
    %78 = arith.truncf %77 : vector<30x256xf32> to vector<30x256xbf16>
    %cst_47 = arith.constant dense<0.000000e+00> : vector<20x256xf32>
    %79 = tpu.matmul %1, %78, %cst_47 {dimension_numbers = #tpu.dot_dimension_numbers<[1], [0], [0], [1], [0, 0, 1, 1], [], []>} : vector<20x30xbf16>, vector<30x256xbf16>, vector<20x256xf32> -> vector<20x256xf32>
    %80 = arith.addf %79, %70 : vector<20x256xf32>
    %cst_48 = arith.constant 0.000000e+00 : f32
    %81 = vector.broadcast %cst_48 : f32 to vector<20x256xf32>
    %82 = arith.maximumf %80, %81 : vector<20x256xf32>
    %83 = arith.truncf %82 : vector<20x256xf32> to vector<20x256xbf16>
    %cst_49 = arith.constant dense<0.000000e+00> : vector<10x256xf32>
    %84 = tpu.matmul %3, %83, %cst_49 {dimension_numbers = #tpu.dot_dimension_numbers<[1], [0], [0], [1], [0, 0, 1, 1], [], []>} : vector<10x20xbf16>, vector<20x256xbf16>, vector<10x256xf32> -> vector<10x256xf32>
    %85 = arith.addf %84, %71 : vector<10x256xf32>
    %cst_50 = arith.constant 0.000000e+00 : f32
    %86 = vector.broadcast %cst_50 : f32 to vector<10x256xf32>
    %87 = arith.maximumf %85, %86 : vector<10x256xf32>
    %88 = arith.truncf %87 : vector<10x256xf32> to vector<10x256xbf16>
    %cst_51 = arith.constant dense<0.000000e+00> : vector<1x256xf32>
    %89 = tpu.matmul %5, %88, %cst_51 {dimension_numbers = #tpu.dot_dimension_numbers<[1], [0], [0], [1], [0, 0, 1, 1], [], []>} : vector<1x10xbf16>, vector<10x256xbf16>, vector<1x256xf32> -> vector<1x256xf32>
    %90 = arith.addf %89, %72 : vector<1x256xf32>
    %c0_52 = arith.constant 0 : index
    %91 = arith.index_cast %65 : i32 to index
    %92 = vector.load %arg3[%c0_52, %91] : memref<1x2048xf32, #tpu.memory_space<vmem>>, vector<1x256xf32>
    tpu.vector_store %arg3[%c0_52, %91], %90 {strides = array<i32>} : memref<1x2048xf32, #tpu.memory_space<vmem>>, vector<1x256xf32>,
    %c3_i32 = arith.constant 3 : i32
    %c256_i32_53 = arith.constant 256 : i32
    %93 = arith.muli %c3_i32, %c256_i32_53 : i32
    %94 = tpu.assume_multiple %93, 256 : i32
    %c0_54 = arith.constant 0 : index
    %95 = arith.index_cast %94 : i32 to index
    %96 = vector.load %arg1[%c0_54, %95] : memref<1x2048xf32, #tpu.memory_space<vmem>>, vector<1x256xf32>
    %c0_55 = arith.constant 0 : index
    %c0_56 = arith.constant 0 : index
    %97 = vector.load %arg2[%c0_55, %c0_56] : memref<136x256xf32, #tpu.memory_space<vmem>>, vector<30x256xf32>
    %c32_57 = arith.constant 32 : index
    %c0_58 = arith.constant 0 : index
    %98 = vector.load %arg2[%c32_57, %c0_58] : memref<136x256xf32, #tpu.memory_space<vmem>>, vector<30x256xf32>
    %c64_59 = arith.constant 64 : index
    %c0_60 = arith.constant 0 : index
    %99 = vector.load %arg2[%c64_59, %c0_60] : memref<136x256xf32, #tpu.memory_space<vmem>>, vector<20x256xf32>
    %c88_61 = arith.constant 88 : index
    %c0_62 = arith.constant 0 : index
    %100 = vector.load %arg2[%c88_61, %c0_62] : memref<136x256xf32, #tpu.memory_space<vmem>>, vector<10x256xf32>
    %c104_63 = arith.constant 104 : index
    %c0_64 = arith.constant 0 : index
    %101 = vector.load %arg2[%c104_63, %c0_64] : memref<136x256xf32, #tpu.memory_space<vmem>>, vector<1x256xf32>
    %102 = vector.broadcast %96 : vector<1x256xf32> to vector<30x256xf32>
    %103 = arith.mulf %97, %102 : vector<30x256xf32>
    %104 = arith.addf %103, %98 : vector<30x256xf32>
    %cst_65 = arith.constant 0.000000e+00 : f32
    %105 = vector.broadcast %cst_65 : f32 to vector<30x256xf32>
    %106 = arith.maximumf %104, %105 : vector<30x256xf32>
    %107 = arith.truncf %106 : vector<30x256xf32> to vector<30x256xbf16>
    %cst_66 = arith.constant dense<0.000000e+00> : vector<20x256xf32>
    %108 = tpu.matmul %1, %107, %cst_66 {dimension_numbers = #tpu.dot_dimension_numbers<[1], [0], [0], [1], [0, 0, 1, 1], [], []>} : vector<20x30xbf16>, vector<30x256xbf16>, vector<20x256xf32> -> vector<20x256xf32>
    %109 = arith.addf %108, %99 : vector<20x256xf32>
    %cst_67 = arith.constant 0.000000e+00 : f32
    %110 = vector.broadcast %cst_67 : f32 to vector<20x256xf32>
    %111 = arith.maximumf %109, %110 : vector<20x256xf32>
    %112 = arith.truncf %111 : vector<20x256xf32> to vector<20x256xbf16>
    %cst_68 = arith.constant dense<0.000000e+00> : vector<10x256xf32>
    %113 = tpu.matmul %3, %112, %cst_68 {dimension_numbers = #tpu.dot_dimension_numbers<[1], [0], [0], [1], [0, 0, 1, 1], [], []>} : vector<10x20xbf16>, vector<20x256xbf16>, vector<10x256xf32> -> vector<10x256xf32>
    %114 = arith.addf %113, %100 : vector<10x256xf32>
    %cst_69 = arith.constant 0.000000e+00 : f32
    %115 = vector.broadcast %cst_69 : f32 to vector<10x256xf32>
    %116 = arith.maximumf %114, %115 : vector<10x256xf32>
    %117 = arith.truncf %116 : vector<10x256xf32> to vector<10x256xbf16>
    %cst_70 = arith.constant dense<0.000000e+00> : vector<1x256xf32>
    %118 = tpu.matmul %5, %117, %cst_70 {dimension_numbers = #tpu.dot_dimension_numbers<[1], [0], [0], [1], [0, 0, 1, 1], [], []>} : vector<1x10xbf16>, vector<10x256xbf16>, vector<1x256xf32> -> vector<1x256xf32>
    %119 = arith.addf %118, %101 : vector<1x256xf32>
    %c0_71 = arith.constant 0 : index
    %120 = arith.index_cast %94 : i32 to index
    %121 = vector.load %arg3[%c0_71, %120] : memref<1x2048xf32, #tpu.memory_space<vmem>>, vector<1x256xf32>
    tpu.vector_store %arg3[%c0_71, %120], %119 {strides = array<i32>} : memref<1x2048xf32, #tpu.memory_space<vmem>>, vector<1x256xf32>,
    %c4_i32 = arith.constant 4 : i32
    %c256_i32_72 = arith.constant 256 : i32
    %122 = arith.muli %c4_i32, %c256_i32_72 : i32
    %123 = tpu.assume_multiple %122, 256 : i32
    %c0_73 = arith.constant 0 : index
    %124 = arith.index_cast %123 : i32 to index
    %125 = vector.load %arg1[%c0_73, %124] : memref<1x2048xf32, #tpu.memory_space<vmem>>, vector<1x256xf32>
    %c0_74 = arith.constant 0 : index
    %c0_75 = arith.constant 0 : index
    %126 = vector.load %arg2[%c0_74, %c0_75] : memref<136x256xf32, #tpu.memory_space<vmem>>, vector<30x256xf32>
    %c32_76 = arith.constant 32 : index
    %c0_77 = arith.constant 0 : index
    %127 = vector.load %arg2[%c32_76, %c0_77] : memref<136x256xf32, #tpu.memory_space<vmem>>, vector<30x256xf32>
    %c64_78 = arith.constant 64 : index
    %c0_79 = arith.constant 0 : index
    %128 = vector.load %arg2[%c64_78, %c0_79] : memref<136x256xf32, #tpu.memory_space<vmem>>, vector<20x256xf32>
    %c88_80 = arith.constant 88 : index
    %c0_81 = arith.constant 0 : index
    %129 = vector.load %arg2[%c88_80, %c0_81] : memref<136x256xf32, #tpu.memory_space<vmem>>, vector<10x256xf32>
    %c104_82 = arith.constant 104 : index
    %c0_83 = arith.constant 0 : index
    %130 = vector.load %arg2[%c104_82, %c0_83] : memref<136x256xf32, #tpu.memory_space<vmem>>, vector<1x256xf32>
    %131 = vector.broadcast %125 : vector<1x256xf32> to vector<30x256xf32>
    %132 = arith.mulf %126, %131 : vector<30x256xf32>
    %133 = arith.addf %132, %127 : vector<30x256xf32>
    %cst_84 = arith.constant 0.000000e+00 : f32
    %134 = vector.broadcast %cst_84 : f32 to vector<30x256xf32>
    %135 = arith.maximumf %133, %134 : vector<30x256xf32>
    %136 = arith.truncf %135 : vector<30x256xf32> to vector<30x256xbf16>
    %cst_85 = arith.constant dense<0.000000e+00> : vector<20x256xf32>
    %137 = tpu.matmul %1, %136, %cst_85 {dimension_numbers = #tpu.dot_dimension_numbers<[1], [0], [0], [1], [0, 0, 1, 1], [], []>} : vector<20x30xbf16>, vector<30x256xbf16>, vector<20x256xf32> -> vector<20x256xf32>
    %138 = arith.addf %137, %128 : vector<20x256xf32>
    %cst_86 = arith.constant 0.000000e+00 : f32
    %139 = vector.broadcast %cst_86 : f32 to vector<20x256xf32>
    %140 = arith.maximumf %138, %139 : vector<20x256xf32>
    %141 = arith.truncf %140 : vector<20x256xf32> to vector<20x256xbf16>
    %cst_87 = arith.constant dense<0.000000e+00> : vector<10x256xf32>
    %142 = tpu.matmul %3, %141, %cst_87 {dimension_numbers = #tpu.dot_dimension_numbers<[1], [0], [0], [1], [0, 0, 1, 1], [], []>} : vector<10x20xbf16>, vector<20x256xbf16>, vector<10x256xf32> -> vector<10x256xf32>
    %143 = arith.addf %142, %129 : vector<10x256xf32>
    %cst_88 = arith.constant 0.000000e+00 : f32
    %144 = vector.broadcast %cst_88 : f32 to vector<10x256xf32>
    %145 = arith.maximumf %143, %144 : vector<10x256xf32>
    %146 = arith.truncf %145 : vector<10x256xf32> to vector<10x256xbf16>
    %cst_89 = arith.constant dense<0.000000e+00> : vector<1x256xf32>
    %147 = tpu.matmul %5, %146, %cst_89 {dimension_numbers = #tpu.dot_dimension_numbers<[1], [0], [0], [1], [0, 0, 1, 1], [], []>} : vector<1x10xbf16>, vector<10x256xbf16>, vector<1x256xf32> -> vector<1x256xf32>
    %148 = arith.addf %147, %130 : vector<1x256xf32>
    %c0_90 = arith.constant 0 : index
    %149 = arith.index_cast %123 : i32 to index
    %150 = vector.load %arg3[%c0_90, %149] : memref<1x2048xf32, #tpu.memory_space<vmem>>, vector<1x256xf32>
    tpu.vector_store %arg3[%c0_90, %149], %148 {strides = array<i32>} : memref<1x2048xf32, #tpu.memory_space<vmem>>, vector<1x256xf32>,
    %c5_i32 = arith.constant 5 : i32
    %c256_i32_91 = arith.constant 256 : i32
    %151 = arith.muli %c5_i32, %c256_i32_91 : i32
    %152 = tpu.assume_multiple %151, 256 : i32
    %c0_92 = arith.constant 0 : index
    %153 = arith.index_cast %152 : i32 to index
    %154 = vector.load %arg1[%c0_92, %153] : memref<1x2048xf32, #tpu.memory_space<vmem>>, vector<1x256xf32>
    %c0_93 = arith.constant 0 : index
    %c0_94 = arith.constant 0 : index
    %155 = vector.load %arg2[%c0_93, %c0_94] : memref<136x256xf32, #tpu.memory_space<vmem>>, vector<30x256xf32>
    %c32_95 = arith.constant 32 : index
    %c0_96 = arith.constant 0 : index
    %156 = vector.load %arg2[%c32_95, %c0_96] : memref<136x256xf32, #tpu.memory_space<vmem>>, vector<30x256xf32>
    %c64_97 = arith.constant 64 : index
    %c0_98 = arith.constant 0 : index
    %157 = vector.load %arg2[%c64_97, %c0_98] : memref<136x256xf32, #tpu.memory_space<vmem>>, vector<20x256xf32>
    %c88_99 = arith.constant 88 : index
    %c0_100 = arith.constant 0 : index
    %158 = vector.load %arg2[%c88_99, %c0_100] : memref<136x256xf32, #tpu.memory_space<vmem>>, vector<10x256xf32>
    %c104_101 = arith.constant 104 : index
    %c0_102 = arith.constant 0 : index
    %159 = vector.load %arg2[%c104_101, %c0_102] : memref<136x256xf32, #tpu.memory_space<vmem>>, vector<1x256xf32>
    %160 = vector.broadcast %154 : vector<1x256xf32> to vector<30x256xf32>
    %161 = arith.mulf %155, %160 : vector<30x256xf32>
    %162 = arith.addf %161, %156 : vector<30x256xf32>
    %cst_103 = arith.constant 0.000000e+00 : f32
    %163 = vector.broadcast %cst_103 : f32 to vector<30x256xf32>
    %164 = arith.maximumf %162, %163 : vector<30x256xf32>
    %165 = arith.truncf %164 : vector<30x256xf32> to vector<30x256xbf16>
    %cst_104 = arith.constant dense<0.000000e+00> : vector<20x256xf32>
    %166 = tpu.matmul %1, %165, %cst_104 {dimension_numbers = #tpu.dot_dimension_numbers<[1], [0], [0], [1], [0, 0, 1, 1], [], []>} : vector<20x30xbf16>, vector<30x256xbf16>, vector<20x256xf32> -> vector<20x256xf32>
    %167 = arith.addf %166, %157 : vector<20x256xf32>
    %cst_105 = arith.constant 0.000000e+00 : f32
    %168 = vector.broadcast %cst_105 : f32 to vector<20x256xf32>
    %169 = arith.maximumf %167, %168 : vector<20x256xf32>
    %170 = arith.truncf %169 : vector<20x256xf32> to vector<20x256xbf16>
    %cst_106 = arith.constant dense<0.000000e+00> : vector<10x256xf32>
    %171 = tpu.matmul %3, %170, %cst_106 {dimension_numbers = #tpu.dot_dimension_numbers<[1], [0], [0], [1], [0, 0, 1, 1], [], []>} : vector<10x20xbf16>, vector<20x256xbf16>, vector<10x256xf32> -> vector<10x256xf32>
    %172 = arith.addf %171, %158 : vector<10x256xf32>
    %cst_107 = arith.constant 0.000000e+00 : f32
    %173 = vector.broadcast %cst_107 : f32 to vector<10x256xf32>
    %174 = arith.maximumf %172, %173 : vector<10x256xf32>
    %175 = arith.truncf %174 : vector<10x256xf32> to vector<10x256xbf16>
    %cst_108 = arith.constant dense<0.000000e+00> : vector<1x256xf32>
    %176 = tpu.matmul %5, %175, %cst_108 {dimension_numbers = #tpu.dot_dimension_numbers<[1], [0], [0], [1], [0, 0, 1, 1], [], []>} : vector<1x10xbf16>, vector<10x256xbf16>, vector<1x256xf32> -> vector<1x256xf32>
    %177 = arith.addf %176, %159 : vector<1x256xf32>
    %c0_109 = arith.constant 0 : index
    %178 = arith.index_cast %152 : i32 to index
    %179 = vector.load %arg3[%c0_109, %178] : memref<1x2048xf32, #tpu.memory_space<vmem>>, vector<1x256xf32>
    tpu.vector_store %arg3[%c0_109, %178], %177 {strides = array<i32>} : memref<1x2048xf32, #tpu.memory_space<vmem>>, vector<1x256xf32>,
    %c6_i32 = arith.constant 6 : i32
    %c256_i32_110 = arith.constant 256 : i32
    %180 = arith.muli %c6_i32, %c256_i32_110 : i32
    %181 = tpu.assume_multiple %180, 256 : i32
    %c0_111 = arith.constant 0 : index
    %182 = arith.index_cast %181 : i32 to index
    %183 = vector.load %arg1[%c0_111, %182] : memref<1x2048xf32, #tpu.memory_space<vmem>>, vector<1x256xf32>
    %c0_112 = arith.constant 0 : index
    %c0_113 = arith.constant 0 : index
    %184 = vector.load %arg2[%c0_112, %c0_113] : memref<136x256xf32, #tpu.memory_space<vmem>>, vector<30x256xf32>
    %c32_114 = arith.constant 32 : index
    %c0_115 = arith.constant 0 : index
    %185 = vector.load %arg2[%c32_114, %c0_115] : memref<136x256xf32, #tpu.memory_space<vmem>>, vector<30x256xf32>
    %c64_116 = arith.constant 64 : index
    %c0_117 = arith.constant 0 : index
    %186 = vector.load %arg2[%c64_116, %c0_117] : memref<136x256xf32, #tpu.memory_space<vmem>>, vector<20x256xf32>
    %c88_118 = arith.constant 88 : index
    %c0_119 = arith.constant 0 : index
    %187 = vector.load %arg2[%c88_118, %c0_119] : memref<136x256xf32, #tpu.memory_space<vmem>>, vector<10x256xf32>
    %c104_120 = arith.constant 104 : index
    %c0_121 = arith.constant 0 : index
    %188 = vector.load %arg2[%c104_120, %c0_121] : memref<136x256xf32, #tpu.memory_space<vmem>>, vector<1x256xf32>
    %189 = vector.broadcast %183 : vector<1x256xf32> to vector<30x256xf32>
    %190 = arith.mulf %184, %189 : vector<30x256xf32>
    %191 = arith.addf %190, %185 : vector<30x256xf32>
    %cst_122 = arith.constant 0.000000e+00 : f32
    %192 = vector.broadcast %cst_122 : f32 to vector<30x256xf32>
    %193 = arith.maximumf %191, %192 : vector<30x256xf32>
    %194 = arith.truncf %193 : vector<30x256xf32> to vector<30x256xbf16>
    %cst_123 = arith.constant dense<0.000000e+00> : vector<20x256xf32>
    %195 = tpu.matmul %1, %194, %cst_123 {dimension_numbers = #tpu.dot_dimension_numbers<[1], [0], [0], [1], [0, 0, 1, 1], [], []>} : vector<20x30xbf16>, vector<30x256xbf16>, vector<20x256xf32> -> vector<20x256xf32>
    %196 = arith.addf %195, %186 : vector<20x256xf32>
    %cst_124 = arith.constant 0.000000e+00 : f32
    %197 = vector.broadcast %cst_124 : f32 to vector<20x256xf32>
    %198 = arith.maximumf %196, %197 : vector<20x256xf32>
    %199 = arith.truncf %198 : vector<20x256xf32> to vector<20x256xbf16>
    %cst_125 = arith.constant dense<0.000000e+00> : vector<10x256xf32>
    %200 = tpu.matmul %3, %199, %cst_125 {dimension_numbers = #tpu.dot_dimension_numbers<[1], [0], [0], [1], [0, 0, 1, 1], [], []>} : vector<10x20xbf16>, vector<20x256xbf16>, vector<10x256xf32> -> vector<10x256xf32>
    %201 = arith.addf %200, %187 : vector<10x256xf32>
    %cst_126 = arith.constant 0.000000e+00 : f32
    %202 = vector.broadcast %cst_126 : f32 to vector<10x256xf32>
    %203 = arith.maximumf %201, %202 : vector<10x256xf32>
    %204 = arith.truncf %203 : vector<10x256xf32> to vector<10x256xbf16>
    %cst_127 = arith.constant dense<0.000000e+00> : vector<1x256xf32>
    %205 = tpu.matmul %5, %204, %cst_127 {dimension_numbers = #tpu.dot_dimension_numbers<[1], [0], [0], [1], [0, 0, 1, 1], [], []>} : vector<1x10xbf16>, vector<10x256xbf16>, vector<1x256xf32> -> vector<1x256xf32>
    %206 = arith.addf %205, %188 : vector<1x256xf32>
    %c0_128 = arith.constant 0 : index
    %207 = arith.index_cast %181 : i32 to index
    %208 = vector.load %arg3[%c0_128, %207] : memref<1x2048xf32, #tpu.memory_space<vmem>>, vector<1x256xf32>
    tpu.vector_store %arg3[%c0_128, %207], %206 {strides = array<i32>} : memref<1x2048xf32, #tpu.memory_space<vmem>>, vector<1x256xf32>,
    %c7_i32 = arith.constant 7 : i32
    %c256_i32_129 = arith.constant 256 : i32
    %209 = arith.muli %c7_i32, %c256_i32_129 : i32
    %210 = tpu.assume_multiple %209, 256 : i32
    %c0_130 = arith.constant 0 : index
    %211 = arith.index_cast %210 : i32 to index
    %212 = vector.load %arg1[%c0_130, %211] : memref<1x2048xf32, #tpu.memory_space<vmem>>, vector<1x256xf32>
    %c0_131 = arith.constant 0 : index
    %c0_132 = arith.constant 0 : index
    %213 = vector.load %arg2[%c0_131, %c0_132] : memref<136x256xf32, #tpu.memory_space<vmem>>, vector<30x256xf32>
    %c32_133 = arith.constant 32 : index
    %c0_134 = arith.constant 0 : index
    %214 = vector.load %arg2[%c32_133, %c0_134] : memref<136x256xf32, #tpu.memory_space<vmem>>, vector<30x256xf32>
    %c64_135 = arith.constant 64 : index
    %c0_136 = arith.constant 0 : index
    %215 = vector.load %arg2[%c64_135, %c0_136] : memref<136x256xf32, #tpu.memory_space<vmem>>, vector<20x256xf32>
    %c88_137 = arith.constant 88 : index
    %c0_138 = arith.constant 0 : index
    %216 = vector.load %arg2[%c88_137, %c0_138] : memref<136x256xf32, #tpu.memory_space<vmem>>, vector<10x256xf32>
    %c104_139 = arith.constant 104 : index
    %c0_140 = arith.constant 0 : index
    %217 = vector.load %arg2[%c104_139, %c0_140] : memref<136x256xf32, #tpu.memory_space<vmem>>, vector<1x256xf32>
    %218 = vector.broadcast %212 : vector<1x256xf32> to vector<30x256xf32>
    %219 = arith.mulf %213, %218 : vector<30x256xf32>
    %220 = arith.addf %219, %214 : vector<30x256xf32>
    %cst_141 = arith.constant 0.000000e+00 : f32
    %221 = vector.broadcast %cst_141 : f32 to vector<30x256xf32>
    %222 = arith.maximumf %220, %221 : vector<30x256xf32>
    %223 = arith.truncf %222 : vector<30x256xf32> to vector<30x256xbf16>
    %cst_142 = arith.constant dense<0.000000e+00> : vector<20x256xf32>
    %224 = tpu.matmul %1, %223, %cst_142 {dimension_numbers = #tpu.dot_dimension_numbers<[1], [0], [0], [1], [0, 0, 1, 1], [], []>} : vector<20x30xbf16>, vector<30x256xbf16>, vector<20x256xf32> -> vector<20x256xf32>
    %225 = arith.addf %224, %215 : vector<20x256xf32>
    %cst_143 = arith.constant 0.000000e+00 : f32
    %226 = vector.broadcast %cst_143 : f32 to vector<20x256xf32>
    %227 = arith.maximumf %225, %226 : vector<20x256xf32>
    %228 = arith.truncf %227 : vector<20x256xf32> to vector<20x256xbf16>
    %cst_144 = arith.constant dense<0.000000e+00> : vector<10x256xf32>
    %229 = tpu.matmul %3, %228, %cst_144 {dimension_numbers = #tpu.dot_dimension_numbers<[1], [0], [0], [1], [0, 0, 1, 1], [], []>} : vector<10x20xbf16>, vector<20x256xbf16>, vector<10x256xf32> -> vector<10x256xf32>
    %230 = arith.addf %229, %216 : vector<10x256xf32>
    %cst_145 = arith.constant 0.000000e+00 : f32
    %231 = vector.broadcast %cst_145 : f32 to vector<10x256xf32>
    %232 = arith.maximumf %230, %231 : vector<10x256xf32>
    %233 = arith.truncf %232 : vector<10x256xf32> to vector<10x256xbf16>
    %cst_146 = arith.constant dense<0.000000e+00> : vector<1x256xf32>
    %234 = tpu.matmul %5, %233, %cst_146 {dimension_numbers = #tpu.dot_dimension_numbers<[1], [0], [0], [1], [0, 0, 1, 1], [], []>} : vector<1x10xbf16>, vector<10x256xbf16>, vector<1x256xf32> -> vector<1x256xf32>
    %235 = arith.addf %234, %217 : vector<1x256xf32>
    %c0_147 = arith.constant 0 : index
    %236 = arith.index_cast %210 : i32 to index
    %237 = vector.load %arg3[%c0_147, %236] : memref<1x2048xf32, #tpu.memory_space<vmem>>, vector<1x256xf32>
    tpu.vector_store %arg3[%c0_147, %236], %235 {strides = array<i32>} : memref<1x2048xf32, #tpu.memory_space<vmem>>, vector<1x256xf32>,
    %c8_i32 = arith.constant 8 : i32
    return
  }
  func.func @transform_0(%arg0: i32) -> (i32, i32) {
    %c0_i32 = arith.constant 0 : i32
    %c0_i32_0 = arith.constant 0 : i32
    return %c0_i32, %arg0 : i32, i32
  }
  func.func @transform_1(%arg0: i32) -> (i32, i32) {
    %c0_i32 = arith.constant 0 : i32
    %c0_i32_0 = arith.constant 0 : i32
    %c0_i32_1 = arith.constant 0 : i32
    return %c0_i32, %c0_i32_0 : i32, i32
  }
  func.func @transform_2(%arg0: i32) -> (i32, i32) {
    %c0_i32 = arith.constant 0 : i32
    %c0_i32_0 = arith.constant 0 : i32
    return %c0_i32, %arg0 : i32, i32
  }
}

</mosaic_0001>

<llo_original>
// kernel: deep_option_pricing_forward.1
$region0: #{deep_option_pricing_forward.1}
  #allocation0 [shape = 'u32[]', space=smem, size = 0x4, offset = 0x4, fixed_abs, tag = 'smem constant byte address 0x4 - core index']
  #allocation1 [shape = 'u32[144,128]{1,0:T(1,128)}', space=vmem, size = 0x12000, scoped, tag = 'internal scratch']
  %s0 = inlined_call_operand.hbm [shape: f32[1,4096], index: 0, kind: input, shape index: {}]
  %s1 = inlined_call_operand.hbm [shape: f32[136,256], index: 1, kind: input, shape index: {}]
  %s2 = inlined_call_operand.hbm [shape: f32[1,4096], index: 2, kind: output, shape index: {}]
  %s3 = sld [smem:[#allocation0]]
  $region49: #{deep_option_pricing_forward.1} parent=0
    _
  %s5 = ssub.s32 1, %s3
  %s6 = scalar_select 0, %s5, %s3
  $region1: #{deep_option_pricing_forward.1} parent=0
    #allocation2 [shape = 'u8[16384]{0}', space=vmem, size = 0x4000, scoped, tag = 'input window, operand 0']
    #allocation3 [shape = 's32[2]{0}', space=sflag, size = 0x8, scoped, tag = 'scoped memory for deep_option_pricing_forward.1']
    #allocation4 [shape = 's32[2]{0}', space=sflag, size = 0x8, scoped, tag = 'scoped memory for deep_option_pricing_forward.1']
    #allocation5 [shape = 'u8[139264]{0}', space=vmem, size = 0x22000, scoped, tag = 'input window, operand 1, single buffered']
    #allocation6 [shape = 's32[1]{0}', space=sflag, size = 0x4, scoped, tag = 'scoped memory for deep_option_pricing_forward.1']
    #allocation7 [shape = 'u8[16384]{0}', space=vmem, size = 0x4000, scoped, tag = 'output window, operand 0']
    %7 = vsyncpa [#allocation3], 0
    %s8 = scalar_lea.sflag [#allocation3], 1
    %9 = vsyncpa %s8, 0
    %10 = vsyncpa [#allocation6], 0
    %11 = vsyncpa [#allocation4], 0
    %s12 = scalar_lea.sflag [#allocation4], 1
    %13 = vsyncpa %s12, 0
    loop: start=0, step=1, limit=4
    $region2: #{deep_option_pricing_forward.1} parent=1 // loop_pre_header
      _
    $region3: #{deep_option_pricing_forward.1} parent=1 // loop_header
      %s15 = sphi 0, %s19
      %p16 = scmp.ge.s32.totalorder %s15, 4
      %s25 = sphi 0, %s27
      %s28 = sphi 0, %s25
      %s29 = sphi 0, %s28
      %s45 = sphi 0, %s29
      %s49 = sphi 0, %s49
      %s51 = sphi 0, %s49
      %s52 = sphi 0, %s51
      %s66 = sphi 0, %s52
      %s72 = sphi 0, %s74
      %s75 = sphi 0, %s72
      %s76 = sphi 0, %s75
      %s92 = sphi 0, %s76
    $region4: #{deep_option_pricing_forward.1} parent=1 // loop_header_branch
      %18 = sbr.rel (%p16) target = $region8
    $region5: #{deep_option_pricing_forward.1} parent=1 // loop_body
      %s20 = ssub.s32 %s15, 1
      %s21 = ssub.s32 %s15, 2
      %s22 = sadd.s32 %s15, 1
      %s23 = ssub.s32 %s15, %s22
      %p24 = scmp.eq.s32.totalorder %s23, 0
      %s26 = sadd.s32 %s25, 1
      %s27 = scalar_select %p24, %s25, %s26
      %p30 = pneg %p24
      %p31 = scmp.eq.s32.totalorder %s15, 1
      %p32 = por %p30, %p31
      %p33 = scmp.ne.s32.totalorder %s25, %s28
      %p34 = scmp.eq.s32.totalorder %s15, 0
      %p35 = por %p33, %p34
      %p36 = scmp.ne.s32.totalorder %s25, %s28
      %p37 = scmp.eq.s32.totalorder %s20, 1
      %p38 = por %p36, %p37
      %p39 = scmp.ne.s32.totalorder %s28, %s29
      %p40 = scmp.eq.s32.totalorder %s20, 0
      %p41 = por %p39, %p40
      %p42 = scmp.ne.s32.totalorder %s28, %s29
      %p43 = scmp.eq.s32.totalorder %s21, 1
      %p44 = por %p42, %p43
      %p46 = scmp.ne.s32.totalorder %s29, %s45
      %p47 = scmp.eq.s32.totalorder %s21, 0
      %p48 = por %p46, %p47
      %s50 = sadd.s32 %s49, 1
      %p53 = scmp.eq.s32.totalorder %s15, 1
      %p54 = scmp.ne.s32.totalorder %s49, %s51
      %p55 = scmp.eq.s32.totalorder %s15, 0
      %p56 = por %p54, %p55
      %p57 = scmp.ne.s32.totalorder %s49, %s51
      %p58 = scmp.eq.s32.totalorder %s20, 1
      %p59 = por %p57, %p58
      %p60 = scmp.ne.s32.totalorder %s51, %s52
      %p61 = scmp.eq.s32.totalorder %s20, 0
      %p62 = por %p60, %p61
      %p63 = scmp.ne.s32.totalorder %s51, %s52
      %p64 = scmp.eq.s32.totalorder %s21, 1
      %p65 = por %p63, %p64
      %p67 = scmp.ne.s32.totalorder %s52, %s66
      %p68 = scmp.eq.s32.totalorder %s21, 0
      %p69 = por %p67, %p68
      %s70 = ssub.s32 %s15, %s22
      %p71 = scmp.eq.s32.totalorder %s70, 0
      %s73 = sadd.s32 %s72, 1
      %s74 = scalar_select %p71, %s72, %s73
      %p77 = pneg %p71
      %p78 = scmp.eq.s32.totalorder %s15, 1
      %p79 = por %p77, %p78
      %p80 = scmp.ne.s32.totalorder %s72, %s75
      %p81 = scmp.eq.s32.totalorder %s15, 0
      %p82 = por %p80, %p81
      %p83 = scmp.ne.s32.totalorder %s72, %s75
      %p84 = scmp.eq.s32.totalorder %s20, 1
      %p85 = por %p83, %p84
      %p86 = scmp.ne.s32.totalorder %s75, %s76
      %p87 = scmp.eq.s32.totalorder %s20, 0
      %p88 = por %p86, %p87
      %p89 = scmp.ne.s32.totalorder %s75, %s76
      %p90 = scmp.eq.s32.totalorder %s21, 1
      %p91 = por %p89, %p90
      %p93 = scmp.ne.s32.totalorder %s76, %s92
      %p94 = scmp.eq.s32.totalorder %s21, 0
      %p95 = por %p93, %p94
      %p96 = scmp.le.s32.totalorder 1, %s15
      %p97 = scmp.lt.s32.totalorder %s15, 3
      %p98 = pnand %p96, %p97
      %p99 = pneg %p98
      // Predicated region
      $region9: #{deep_option_pricing_forward.1} parent=5 // pred_check
        _
      $region10: #{deep_option_pricing_forward.1} parent=5 // pred_check_branch
        %101 = sbr.rel (%p98) target = $region12
      $region11: #{deep_option_pricing_forward.1} parent=5 // pred_region
        %s102 = ssub.s32 %s15, 1
        // Predicated region
        $region13: #{deep_option_pricing_forward.1} parent=11 // pred_check
          %p103 = pneg %p62
        $region14: #{deep_option_pricing_forward.1} parent=11 // pred_check_branch
          %105 = sbr.rel (%p103) target = $region16
        $region15: #{deep_option_pricing_forward.1} parent=11 // pred_region
          %s107 = ssub.s32 4352, 4352
          %108 = vsyncadd [#allocation6], %s107
          %s109 = sshll.u32 [#allocation5], 4
          %s110 = int_to_ptr.vmem [resolvable:$true] %s109
          %115 = dma.hbm_to_vmem [thread:$0]  %s1, 4352, %s110, [#allocation6], 256, 256, 16
        $region16: #{deep_option_pricing_forward.1} parent=11 // pred_fallthru
          _
      $region12: #{deep_option_pricing_forward.1} parent=5 // pred_fallthru
        _
      %p116 = scmp.lt.s32.totalorder %s15, 2
      // Predicated region
      $region17: #{deep_option_pricing_forward.1} parent=5 // pred_check
        %p117 = pneg %p116
      $region18: #{deep_option_pricing_forward.1} parent=5 // pred_check_branch
        %119 = sbr.rel (%p117) target = $region20
      $region19: #{deep_option_pricing_forward.1} parent=5 // pred_region
        // Predicated region
        $region21: #{deep_option_pricing_forward.1} parent=19 // pred_check
          %p120 = pneg %p35
        $region22: #{deep_option_pricing_forward.1} parent=19 // pred_check_branch
          %122 = sbr.rel (%p120) target = $region24
        $region23: #{deep_option_pricing_forward.1} parent=19 // pred_region
          %s123 = sand.u32 %s25, 1
          %s124 = scalar_lea.sflag [#allocation3], %s123
          %s125 = sand.u32 %s25, 1
          %s126 = smul.addr %s125, 16
          %s127 = scalar_lea.vmem [#allocation2], %s126
          %s128 = smul.u32 16, %s15
          %s130 = ssub.s32 256, 256
          %131 = vsyncadd %s124, %s130
          %s132 = smul.addr %s128, 16
          %s133 = scalar_lea.hbm %s0, %s132
          %s135 = sshll.u32 %s127, 4
          %s136 = int_to_ptr.vmem [resolvable:$true] %s135
          %138 = dma.hbm_to_vmem [thread:$0]  %s133, 256, %s136, %s124
        $region24: #{deep_option_pricing_forward.1} parent=19 // pred_fallthru
          _
      $region20: #{deep_option_pricing_forward.1} parent=5 // pred_fallthru
        _
      %p139 = scmp.le.s32.totalorder 1, %s15
      %p140 = scmp.lt.s32.totalorder %s15, 3
      %p141 = pnand %p139, %p140
      %p142 = pneg %p141
      // Predicated region
      $region25: #{deep_option_pricing_forward.1} parent=5 // pred_check
        _
      $region26: #{deep_option_pricing_forward.1} parent=5 // pred_check_branch
        %144 = sbr.rel (%p141) target = $region28
      $region27: #{deep_option_pricing_forward.1} parent=5 // pred_region
        %s145 = ssub.s32 %s15, 1
        %s146 = sand.u32 %s28, 1
        %s147 = scalar_lea.sflag [#allocation3], %s146
        %s148 = sand.u32 %s28, 1
        %s149 = smul.addr %s148, 16
        %s150 = scalar_lea.vmem [#allocation2], %s149
        // Predicated region
        $region29: #{deep_option_pricing_forward.1} parent=27 // pred_check
          %p151 = pneg %p41
        $region30: #{deep_option_pricing_forward.1} parent=27 // pred_check_branch
          %153 = sbr.rel (%p151) target = $region32
        $region31: #{deep_option_pricing_forward.1} parent=27 // pred_region
          %154 = dma.done %s147, 256
        $region32: #{deep_option_pricing_forward.1} parent=27 // pred_fallthru
          _
        // Predicated region
        $region33: #{deep_option_pricing_forward.1} parent=27 // pred_check
          %p155 = pneg %p62
        $region34: #{deep_option_pricing_forward.1} parent=27 // pred_check_branch
          %157 = sbr.rel (%p155) target = $region36
        $region35: #{deep_option_pricing_forward.1} parent=27 // pred_region
          %158 = dma.done [#allocation6], 4352
        $region36: #{deep_option_pricing_forward.1} parent=27 // pred_fallthru
          _
        %s159 = sand.u32 %s28, 1
        %s160 = scalar_lea.sflag [#allocation3], %s159
        %s161 = sand.u32 %s28, 1
        %s162 = smul.addr %s161, 16
        %s163 = scalar_lea.vmem [#allocation2], %s162
        %p164 = pneg %p41
        %p165 = pneg %p38
        %p166 = pneg %p62
        %p167 = pneg %p59
        %p168 = pneg %p88
        %p169 = pneg %p85
        %s170 = sand.u32 %s75, 1
        %s171 = scalar_lea.sflag [#allocation4], %s170
        %s172 = sand.u32 %s75, 1
        %s173 = smul.addr %s172, 16
        %s174 = scalar_lea.vmem [#allocation7], %s173
        %s175 = smul.u32 16, %s20
        %s176 = smul.u32 16, %s20
        %v178 = vld [vmem:[#allocation5 + $0xe0] sm:$0xff]
        %v179 = vld [vmem:[#allocation5 + $0xf0] sm:$0xff]
        %v180 = vld [vmem:[#allocation5 + $0x100] sm:$0xf]
        %v181 = vpack.c.bf16 %v179, %v178
        %v182 = vpack.c.bf16 %v180, %v180
        %v183 = vld [vmem:[#allocation5 + $0xe8] sm:$0xff]
        %v184 = vld [vmem:[#allocation5 + $0xf8] sm:$0x3]
        %v185 = vpack.c.bf16 %v184, %v183
        %v186 = vld [vmem:[#allocation5 + $0xe8] ss:$0 sm:$0xff]
        %v187 = vpack.c.bf16 %v186, %v186
        %v188 = vld [vmem:[%s150] sm:$0x3]
        %v189 = vld [vmem:[#allocation5] sm:$0xff]
        %v190 = vld [vmem:[#allocation5 + $0x8] sm:$0xff]
        %v191 = vld [vmem:[#allocation5 + $0x10] sm:$0xff]
        %v192 = vld [vmem:[#allocation5 + $0x18] sm:$0xff]
        %v193 = vld [vmem:[#allocation5 + $0x20] sm:$0xff]
        %v194 = vld [vmem:[#allocation5 + $0x28] sm:$0xff]
        %v195 = vld [vmem:[#allocation5 + $0x30] sm:$0x3f]
        %v196 = vld [vmem:[#allocation5 + $0x38] sm:$0x3f]
        %v197 = vld [vmem:[#allocation5 + $0x40] sm:$0xff]
        %v198 = vld [vmem:[#allocation5 + $0x48] sm:$0xff]
        %v199 = vld [vmem:[#allocation5 + $0x50] sm:$0xff]
        %v200 = vld [vmem:[#allocation5 + $0x58] sm:$0xff]
        %v201 = vld [vmem:[#allocation5 + $0x60] sm:$0xff]
        %v202 = vld [vmem:[#allocation5 + $0x68] sm:$0xff]
        %v203 = vld [vmem:[#allocation5 + $0x70] sm:$0x3f]
        %v204 = vld [vmem:[#allocation5 + $0x78] sm:$0x3f]
        %v205 = vld [vmem:[#allocation5 + $0x80] sm:$0xff]
        %v206 = vld [vmem:[#allocation5 + $0x88] sm:$0xff]
        %v207 = vld [vmem:[#allocation5 + $0x90] sm:$0xff]
        %v208 = vld [vmem:[#allocation5 + $0x98] sm:$0xff]
        %v209 = vld [vmem:[#allocation5 + $0xa0] sm:$0xf]
        %v210 = vld [vmem:[#allocation5 + $0xa8] sm:$0xf]
        %v211 = vld [vmem:[#allocation5 + $0xb0] sm:$0xff]
        %v212 = vld [vmem:[#allocation5 + $0xb8] sm:$0xff]
        %v213 = vld [vmem:[#allocation5 + $0xc0] sm:$0x3]
        %v214 = vld [vmem:[#allocation5 + $0xc8] sm:$0x3]
        %s215 = scalar_lea.vmem [#allocation5], 208
        %v216 = vld [vmem:[%s215] ss:$8 sm:$0x3]
        %v218 = vlaneseq
        %v219 = vshrl.u32 %v218, 7
        %v220 = vsub.s32 0, %v219
        %v221 = vrot.slane %v188, %v220
        %v222 = vlaneseq
        %v223 = vshrl.u32 %v222, 7
        %v224 = vsub.s32 1, %v223
        %v225 = vrot.slane %v188, %v224
        %v228 = vmul.f32 %v189, %v221
        %v229 = vmul.f32 %v190, %v225
        %v230 = vmul.f32 %v191, %v221
        %v231 = vmul.f32 %v192, %v225
        %v232 = vmul.f32 %v193, %v221
        %v233 = vmul.f32 %v194, %v225
        %v234 = vmul.f32 %v195, %v221
        %v235 = vmul.f32 %v196, %v225
        %v236 = vadd.f32 %v228, %v197
        %v237 = vadd.f32 %v229, %v198
        %v238 = vadd.f32 %v230, %v199
        %v239 = vadd.f32 %v231, %v200
        %v240 = vadd.f32 %v232, %v201
        %v241 = vadd.f32 %v233, %v202
        %v242 = vadd.f32 %v234, %v203
        %v243 = vadd.f32 %v235, %v204
        %v244 = vmax.f32 %v236, 0.0
        %v245 = vmax.f32 %v237, 0.0
        %v246 = vmax.f32 %v238, 0.0
        %v247 = vmax.f32 %v239, 0.0
        %v248 = vmax.f32 %v240, 0.0
        %v249 = vmax.f32 %v241, 0.0
        %v250 = vmax.f32 %v242, 0.0
        %v251 = vmax.f32 %v243, 0.0
        %v252 = vpack.c.bf16 %v246, %v244
        %v253 = vpack.c.bf16 %v247, %v245
        %v254 = vpack.c.bf16 %v250, %v248
        %v255 = vpack.c.bf16 %v251, %v249
        %vm256 = vcmask 244736
        %v258 = vsel %vm256, %v181, 0
        %v261 = vsel %vm256, %v182, 0
        %vm263 = vcmask 1046528
        %v265 = vsel %vm263, %v254, 0
        %v268 = vsel %vm263, %v255, 0
        %270 = vmatprep.subr.bf16.mxu0 %v253
        %271 = vmatpush1.bf16.msra.mxu0 %v252
        %272 = vmatprep.subr.bf16.mxu0 %v268
        %273 = vmatpush1.bf16.msra.mxu0 %v265
        %274 = vmatprep.subr.bf16.mxu0 0
        %275 = vmatpush1.bf16.msra.mxu0 0
        %276 = vmatprep.subr.bf16.mxu0 0
        %277 = vmatpush1.bf16.msra.mxu0 0
        %278 = vmatprep.subr.bf16.mxu0 0
        %279 = vmatpush1.bf16.msra.mxu0 0
        %280 = vmatprep.subr.bf16.mxu0 0
        %281 = vmatpush1.bf16.msra.mxu0 0
        %282 = vmatprep.subr.bf16.mxu0 0
        %283 = vmatpush1.bf16.msra.mxu0 0
        %284 = vmatprep.subr.bf16.mxu0 0
        %285 = vmatpush1.bf16.msra.mxu0 0
        %286 = vmatprep.subr.bf16.mxu0 0
        %287 = vmatpush1.bf16.msra.mxu0 0
        %288 = vmatprep.subr.bf16.mxu0 0
        %289 = vmatpush1.bf16.msra.mxu0 0
        %290 = vmatprep.subr.bf16.mxu0 0
        %291 = vmatpush1.bf16.msra.mxu0 0
        %292 = vmatprep.subr.bf16.mxu0 0
        %293 = vmatpush1.bf16.msra.mxu0 0
        %294 = vmatprep.subr.bf16.mxu0 0
        %295 = vmatpush1.bf16.msra.mxu0 0
        %296 = vmatprep.subr.bf16.mxu0 0
        %297 = vmatpush1.bf16.msra.mxu0 0
        %298 = vmatprep.subr.bf16.mxu0 0
        %299 = vmatpush1.bf16.msra.mxu0 0
        %300 = vmatprep.subr.bf16.mxu0 0
        %301 = vmatpush1.bf16.msra.mxu0 0
        %302 = vmatprep.mubr.bf16.mxu0 0
        %303 = vmatmul.mubr.bf16.gmra.mrb[0].mxu0 %v258
        %v304 = vpop.f32.mrb[0].mxu0
        %v305 = vadd.f32 %v205, %v304
        %v306 = vpop.f32.mrb[0].mxu0
        %v307 = vadd.f32 %v206, %v306
        %v308 = vpop.f32.mrb[0].mxu0
        %v309 = vadd.f32 %v207, %v308
        %v310 = vpop.f32.mrb[0].mxu0
        %v311 = vadd.f32 %v208, %v310
        %312 = vmatprep.mubr.bf16.mxu0 0
        %313 = vmatmul.mubr.bf16.gmra.mrb[0].mxu0 %v261
        %v314 = vpop.f32.mrb[0].mxu0
        %v315 = vadd.f32 %v209, %v314
        %v316 = vpop.f32.mrb[0].mxu0
        %v317 = vadd.f32 %v210, %v316
        %v318 = vpop.f32.mrb[0].mxu0
        %v319 = vpop.f32.mrb[0].mxu0
        %320 = vdwg.mxu0
        %v321 = vmax.f32 %v305, 0.0
        %v322 = vmax.f32 %v307, 0.0
        %v323 = vmax.f32 %v309, 0.0
        %v324 = vmax.f32 %v311, 0.0
        %v325 = vmax.f32 %v315, 0.0
        %v326 = vmax.f32 %v317, 0.0
        %v327 = vpack.c.bf16 %v323, %v321
        %v328 = vpack.c.bf16 %v324, %v322
        %v329 = vpack.c.bf16 %v325, %v325
        %v330 = vpack.c.bf16 %v326, %v326
        %vm331 = vcmask 162816
        %v333 = vsel %vm331, %v185, 0
        %vm335 = vcmask 1041408
        %v337 = vsel %vm335, %v329, 0
        %v340 = vsel %vm335, %v330, 0
        %342 = vmatprep.subr.bf16.mxu0 %v328
        %343 = vmatpush1.bf16.msra.mxu0 %v327
        %344 = vmatprep.subr.bf16.mxu0 %v340
        %345 = vmatpush1.bf16.msra.mxu0 %v337
        %346 = vmatprep.subr.bf16.mxu0 0
        %347 = vmatpush1.bf16.msra.mxu0 0
        %348 = vmatprep.subr.bf16.mxu0 0
        %349 = vmatpush1.bf16.msra.mxu0 0
        %350 = vmatprep.subr.bf16.mxu0 0
        %351 = vmatpush1.bf16.msra.mxu0 0
        %352 = vmatprep.subr.bf16.mxu0 0
        %353 = vmatpush1.bf16.msra.mxu0 0
        %354 = vmatprep.subr.bf16.mxu0 0
        %355 = vmatpush1.bf16.msra.mxu0 0
        %356 = vmatprep.subr.bf16.mxu0 0
        %357 = vmatpush1.bf16.msra.mxu0 0
        %358 = vmatprep.subr.bf16.mxu0 0
        %359 = vmatpush1.bf16.msra.mxu0 0
        %360 = vmatprep.subr.bf16.mxu0 0
        %361 = vmatpush1.bf16.msra.mxu0 0
        %362 = vmatprep.subr.bf16.mxu0 0
        %363 = vmatpush1.bf16.msra.mxu0 0
        %364 = vmatprep.subr.bf16.mxu0 0
        %365 = vmatpush1.bf16.msra.mxu0 0
        %366 = vmatprep.subr.bf16.mxu0 0
        %367 = vmatpush1.bf16.msra.mxu0 0
        %368 = vmatprep.subr.bf16.mxu0 0
        %369 = vmatpush1.bf16.msra.mxu0 0
        %370 = vmatprep.subr.bf16.mxu0 0
        %371 = vmatpush1.bf16.msra.mxu0 0
        %372 = vmatprep.subr.bf16.mxu0 0
        %373 = vmatpush1.bf16.msra.mxu0 0
        %374 = vmatprep.mubr.bf16.mxu0 0
        %375 = vmatmul.mubr.bf16.gmra.mrb[0].mxu0 %v333
        %v376 = vpop.f32.mrb[0].mxu0
        %v377 = vadd.f32 %v211, %v376
        %v378 = vpop.f32.mrb[0].mxu0
        %v379 = vadd.f32 %v212, %v378
        %v380 = vpop.f32.mrb[0].mxu0
        %v381 = vadd.f32 %v213, %v380
        %v382 = vpop.f32.mrb[0].mxu0
        %v383 = vadd.f32 %v214, %v382
        %384 = vdwg.mxu0
        %v385 = vmax.f32 %v377, 0.0
        %v386 = vmax.f32 %v379, 0.0
        %v387 = vmax.f32 %v381, 0.0
        %v388 = vmax.f32 %v383, 0.0
        %v389 = vpack.c.bf16 %v387, %v385
        %v390 = vpack.c.bf16 %v388, %v386
        %392 = vrot.lane.b32.xlu0 %v187, 96
        %v393 = vpop.permute.xlu0 %392
        %v395 = vlaneseq
        %v396 = vshrl.u32 %v395, 7
        %v397 = vsub.s32 0, %v396
        %v398 = vrot.slane %v216, %v397
        %v399 = vlaneseq
        %v400 = vshrl.u32 %v399, 7
        %v401 = vsub.s32 1, %v400
        %v402 = vrot.slane %v216, %v401
        %vm405 = vcmask 80896
        %v407 = vsel %vm405, %v393, 0
        %vm409 = vcmask 1044480
        %v411 = vsel %vm409, %v389, 0
        %v414 = vsel %vm409, %v390, 0
        %416 = vmatprep.subr.bf16.mxu0 %v414
        %417 = vmatpush1.bf16.msra.mxu0 %v411
        %418 = vmatprep.subr.bf16.mxu0 0
        %419 = vmatpush1.bf16.msra.mxu0 0
        %420 = vmatprep.subr.bf16.mxu0 0
        %421 = vmatpush1.bf16.msra.mxu0 0
        %422 = vmatprep.subr.bf16.mxu0 0
        %423 = vmatpush1.bf16.msra.mxu0 0
        %424 = vmatprep.subr.bf16.mxu0 0
        %425 = vmatpush1.bf16.msra.mxu0 0
        %426 = vmatprep.subr.bf16.mxu0 0
        %427 = vmatpush1.bf16.msra.mxu0 0
        %428 = vmatprep.subr.bf16.mxu0 0
        %429 = vmatpush1.bf16.msra.mxu0 0
        %430 = vmatprep.subr.bf16.mxu0 0
        %431 = vmatpush1.bf16.msra.mxu0 0
        %432 = vmatprep.subr.bf16.mxu0 0
        %433 = vmatpush1.bf16.msra.mxu0 0
        %434 = vmatprep.subr.bf16.mxu0 0
        %435 = vmatpush1.bf16.msra.mxu0 0
        %436 = vmatprep.subr.bf16.mxu0 0
        %437 = vmatpush1.bf16.msra.mxu0 0
        %438 = vmatprep.subr.bf16.mxu0 0
        %439 = vmatpush1.bf16.msra.mxu0 0
        %440 = vmatprep.subr.bf16.mxu0 0
        %441 = vmatpush1.bf16.msra.mxu0 0
        %442 = vmatprep.subr.bf16.mxu0 0
        %443 = vmatpush1.bf16.msra.mxu0 0
        %444 = vmatprep.subr.bf16.mxu0 0
        %445 = vmatpush1.bf16.msra.mxu0 0
        %446 = vmatprep.subr.bf16.mxu0 0
        %447 = vmatpush1.bf16.msra.mxu0 0
        %448 = vmatprep.mubr.bf16.mxu0 0
        %449 = vmatmul.mubr.bf16.gmra.mrb[0].mxu0 %v407
        %v450 = vpop.f32.mrb[0].mxu0
        %v451 = vadd.f32 %v398, %v450
        %v452 = vpop.f32.mrb[0].mxu0
        %v453 = vadd.f32 %v402, %v452
        %v454 = vpop.f32.mrb[0].mxu0
        %v455 = vpop.f32.mrb[0].mxu0
        %456 = vdwg.mxu0
        %v459 = vcombine.low %v451, %v453
        %v461 = vunpack.c.l.s4 1966171168
        %v462 = vunpack.c.0.s8 %v461
        %v463 = vlaneseq
        %v464 = vshrl.u32 %v463, 7
        %v465 = vsub.s32 %v462, %v464
        %v466 = vrot.slane %v459, %v465
        %v468 = vunpack.c.l.s4 1966171168
        %v469 = vunpack.c.0.s8 %v468
        %v470 = vlaneseq
        %v471 = vshrl.u32 %v470, 7
        %v472 = vsub.s32 %v469, %v471
        %v473 = vrot.slane %v466, %v472
        %v475 = vlaneseq
        %vm476 = vcmp.ge.s32.totalorder %v475, 0
        %vm477 = vcmp.lt.s32.totalorder %v475, 256
        %vm478 = vmand %vm476, %vm477
        %479 = vst.msk [vmem:[%s174] sm:$0x3] %vm478, %v473
        %s480 = scalar_lea.vmem %s150, 2 [#allocation2]
        %v481 = vld [vmem:[%s480] sm:$0x3]
        %v482 = vld [vmem:[#allocation5] sm:$0xff]
        %v483 = vld [vmem:[#allocation5 + $0x8] sm:$0xff]
        %v484 = vld [vmem:[#allocation5 + $0x10] sm:$0xff]
        %v485 = vld [vmem:[#allocation5 + $0x18] sm:$0xff]
        %v486 = vld [vmem:[#allocation5 + $0x20] sm:$0xff]
        %v487 = vld [vmem:[#allocation5 + $0x28] sm:$0xff]
        %v488 = vld [vmem:[#allocation5 + $0x30] sm:$0x3f]
        %v489 = vld [vmem:[#allocation5 + $0x38] sm:$0x3f]
        %v490 = vld [vmem:[#allocation5 + $0x40] sm:$0xff]
        %v491 = vld [vmem:[#allocation5 + $0x48] sm:$0xff]
        %v492 = vld [vmem:[#allocation5 + $0x50] sm:$0xff]
        %v493 = vld [vmem:[#allocation5 + $0x58] sm:$0xff]
        %v494 = vld [vmem:[#allocation5 + $0x60] sm:$0xff]
        %v495 = vld [vmem:[#allocation5 + $0x68] sm:$0xff]
        %v496 = vld [vmem:[#allocation5 + $0x70] sm:$0x3f]
        %v497 = vld [vmem:[#allocation5 + $0x78] sm:$0x3f]
        %v498 = vld [vmem:[#allocation5 + $0x80] sm:$0xff]
        %v499 = vld [vmem:[#allocation5 + $0x88] sm:$0xff]
        %v500 = vld [vmem:[#allocation5 + $0x90] sm:$0xff]
        %v501 = vld [vmem:[#allocation5 + $0x98] sm:$0xff]
        %v502 = vld [vmem:[#allocation5 + $0xa0] sm:$0xf]
        %v503 = vld [vmem:[#allocation5 + $0xa8] sm:$0xf]
        %v504 = vld [vmem:[#allocation5 + $0xb0] sm:$0xff]
        %v505 = vld [vmem:[#allocation5 + $0xb8] sm:$0xff]
        %v506 = vld [vmem:[#allocation5 + $0xc0] sm:$0x3]
        %v507 = vld [vmem:[#allocation5 + $0xc8] sm:$0x3]
        %v508 = vld [vmem:[%s215] ss:$8 sm:$0x3]
        %v510 = vlaneseq
        %v511 = vshrl.u32 %v510, 7
        %v512 = vsub.s32 0, %v511
        %v513 = vrot.slane %v481, %v512
        %v514 = vlaneseq
        %v515 = vshrl.u32 %v514, 7
        %v516 = vsub.s32 1, %v515
        %v517 = vrot.slane %v481, %v516
        %v520 = vmul.f32 %v482, %v513
        %v521 = vmul.f32 %v483, %v517
        %v522 = vmul.f32 %v484, %v513
        %v523 = vmul.f32 %v485, %v517
        %v524 = vmul.f32 %v486, %v513
        %v525 = vmul.f32 %v487, %v517
        %v526 = vmul.f32 %v488, %v513
        %v527 = vmul.f32 %v489, %v517
        %v528 = vadd.f32 %v520, %v490
        %v529 = vadd.f32 %v521, %v491
        %v530 = vadd.f32 %v522, %v492
        %v531 = vadd.f32 %v523, %v493
        %v532 = vadd.f32 %v524, %v494
        %v533 = vadd.f32 %v525, %v495
        %v534 = vadd.f32 %v526, %v496
        %v535 = vadd.f32 %v527, %v497
        %v536 = vmax.f32 %v528, 0.0
        %v537 = vmax.f32 %v529, 0.0
        %v538 = vmax.f32 %v530, 0.0
        %v539 = vmax.f32 %v531, 0.0
        %v540 = vmax.f32 %v532, 0.0
        %v541 = vmax.f32 %v533, 0.0
        %v542 = vmax.f32 %v534, 0.0
        %v543 = vmax.f32 %v535, 0.0
        %v544 = vpack.c.bf16 %v538, %v536
        %v545 = vpack.c.bf16 %v539, %v537
        %v546 = vpack.c.bf16 %v542, %v540
        %v547 = vpack.c.bf16 %v543, %v541
        %v549 = vsel %vm263, %v546, 0
        %v552 = vsel %vm263, %v547, 0
        %554 = vmatprep.subr.bf16.mxu0 %v545
        %555 = vmatpush1.bf16.msra.mxu0 %v544
        %556 = vmatprep.subr.bf16.mxu0 %v552
        %557 = vmatpush1.bf16.msra.mxu0 %v549
        %558 = vmatprep.subr.bf16.mxu0 0
        %559 = vmatpush1.bf16.msra.mxu0 0
        %560 = vmatprep.subr.bf16.mxu0 0
        %561 = vmatpush1.bf16.msra.mxu0 0
        %562 = vmatprep.subr.bf16.mxu0 0
        %563 = vmatpush1.bf16.msra.mxu0 0
        %564 = vmatprep.subr.bf16.mxu0 0
        %565 = vmatpush1.bf16.msra.mxu0 0
        %566 = vmatprep.subr.bf16.mxu0 0
        %567 = vmatpush1.bf16.msra.mxu0 0
        %568 = vmatprep.subr.bf16.mxu0 0
        %569 = vmatpush1.bf16.msra.mxu0 0
        %570 = vmatprep.subr.bf16.mxu0 0
        %571 = vmatpush1.bf16.msra.mxu0 0
        %572 = vmatprep.subr.bf16.mxu0 0
        %573 = vmatpush1.bf16.msra.mxu0 0
        %574 = vmatprep.subr.bf16.mxu0 0
        %575 = vmatpush1.bf16.msra.mxu0 0
        %576 = vmatprep.subr.bf16.mxu0 0
        %577 = vmatpush1.bf16.msra.mxu0 0
        %578 = vmatprep.subr.bf16.mxu0 0
        %579 = vmatpush1.bf16.msra.mxu0 0
        %580 = vmatprep.subr.bf16.mxu0 0
        %581 = vmatpush1.bf16.msra.mxu0 0
        %582 = vmatprep.subr.bf16.mxu0 0
        %583 = vmatpush1.bf16.msra.mxu0 0
        %584 = vmatprep.subr.bf16.mxu0 0
        %585 = vmatpush1.bf16.msra.mxu0 0
        %586 = vmatprep.mubr.bf16.mxu0 0
        %587 = vmatmul.mubr.bf16.gmra.mrb[0].mxu0 %v258
        %v588 = vpop.f32.mrb[0].mxu0
        %v589 = vadd.f32 %v498, %v588
        %v590 = vpop.f32.mrb[0].mxu0
        %v591 = vadd.f32 %v499, %v590
        %v592 = vpop.f32.mrb[0].mxu0
        %v593 = vadd.f32 %v500, %v592
        %v594 = vpop.f32.mrb[0].mxu0
        %v595 = vadd.f32 %v501, %v594
        %596 = vmatprep.mubr.bf16.mxu0 0
        %597 = vmatmul.mubr.bf16.gmra.mrb[0].mxu0 %v261
        %v598 = vpop.f32.mrb[0].mxu0
        %v599 = vadd.f32 %v502, %v598
        %v600 = vpop.f32.mrb[0].mxu0
        %v601 = vadd.f32 %v503, %v600
        %v602 = vpop.f32.mrb[0].mxu0
        %v603 = vpop.f32.mrb[0].mxu0
        %604 = vdwg.mxu0
        %v605 = vmax.f32 %v589, 0.0
        %v606 = vmax.f32 %v591, 0.0
        %v607 = vmax.f32 %v593, 0.0
        %v608 = vmax.f32 %v595, 0.0
        %v609 = vmax.f32 %v599, 0.0
        %v610 = vmax.f32 %v601, 0.0
        %v611 = vpack.c.bf16 %v607, %v605
        %v612 = vpack.c.bf16 %v608, %v606
        %v613 = vpack.c.bf16 %v609, %v609
        %v614 = vpack.c.bf16 %v610, %v610
        %v616 = vsel %vm335, %v613, 0
        %v619 = vsel %vm335, %v614, 0
        %621 = vmatprep.subr.bf16.mxu0 %v612
        %622 = vmatpush1.bf16.msra.mxu0 %v611
        %623 = vmatprep.subr.bf16.mxu0 %v619
        %624 = vmatpush1.bf16.msra.mxu0 %v616
        %625 = vmatprep.subr.bf16.mxu0 0
        %626 = vmatpush1.bf16.msra.mxu0 0
        %627 = vmatprep.subr.bf16.mxu0 0
        %628 = vmatpush1.bf16.msra.mxu0 0
        %629 = vmatprep.subr.bf16.mxu0 0
        %630 = vmatpush1.bf16.msra.mxu0 0
        %631 = vmatprep.subr.bf16.mxu0 0
        %632 = vmatpush1.bf16.msra.mxu0 0
        %633 = vmatprep.subr.bf16.mxu0 0
        %634 = vmatpush1.bf16.msra.mxu0 0
        %635 = vmatprep.subr.bf16.mxu0 0
        %636 = vmatpush1.bf16.msra.mxu0 0
        %637 = vmatprep.subr.bf16.mxu0 0
        %638 = vmatpush1.bf16.msra.mxu0 0
        %639 = vmatprep.subr.bf16.mxu0 0
        %640 = vmatpush1.bf16.msra.mxu0 0
        %641 = vmatprep.subr.bf16.mxu0 0
        %642 = vmatpush1.bf16.msra.mxu0 0
        %643 = vmatprep.subr.bf16.mxu0 0
        %644 = vmatpush1.bf16.msra.mxu0 0
        %645 = vmatprep.subr.bf16.mxu0 0
        %646 = vmatpush1.bf16.msra.mxu0 0
        %647 = vmatprep.subr.bf16.mxu0 0
        %648 = vmatpush1.bf16.msra.mxu0 0
        %649 = vmatprep.subr.bf16.mxu0 0
        %650 = vmatpush1.bf16.msra.mxu0 0
        %651 = vmatprep.subr.bf16.mxu0 0
        %652 = vmatpush1.bf16.msra.mxu0 0
        %653 = vmatprep.mubr.bf16.mxu0 0
        %654 = vmatmul.mubr.bf16.gmra.mrb[0].mxu0 %v333
        %v655 = vpop.f32.mrb[0].mxu0
        %v656 = vadd.f32 %v504, %v655
        %v657 = vpop.f32.mrb[0].mxu0
        %v658 = vadd.f32 %v505, %v657
        %v659 = vpop.f32.mrb[0].mxu0
        %v660 = vadd.f32 %v506, %v659
        %v661 = vpop.f32.mrb[0].mxu0
        %v662 = vadd.f32 %v507, %v661
        %663 = vdwg.mxu0
        %v664 = vmax.f32 %v656, 0.0
        %v665 = vmax.f32 %v658, 0.0
        %v666 = vmax.f32 %v660, 0.0
        %v667 = vmax.f32 %v662, 0.0
        %v668 = vpack.c.bf16 %v666, %v664
        %v669 = vpack.c.bf16 %v667, %v665
        %v671 = vlaneseq
        %v672 = vshrl.u32 %v671, 7
        %v673 = vsub.s32 0, %v672
        %v674 = vrot.slane %v508, %v673
        %v675 = vlaneseq
        %v676 = vshrl.u32 %v675, 7
        %v677 = vsub.s32 1, %v676
        %v678 = vrot.slane %v508, %v677
        %v682 = vsel %vm409, %v668, 0
        %v685 = vsel %vm409, %v669, 0
        %687 = vmatprep.subr.bf16.mxu0 %v685
        %688 = vmatpush1.bf16.msra.mxu0 %v682
        %689 = vmatprep.subr.bf16.mxu0 0
        %690 = vmatpush1.bf16.msra.mxu0 0
        %691 = vmatprep.subr.bf16.mxu0 0
        %692 = vmatpush1.bf16.msra.mxu0 0
        %693 = vmatprep.subr.bf16.mxu0 0
        %694 = vmatpush1.bf16.msra.mxu0 0
        %695 = vmatprep.subr.bf16.mxu0 0
        %696 = vmatpush1.bf16.msra.mxu0 0
        %697 = vmatprep.subr.bf16.mxu0 0
        %698 = vmatpush1.bf16.msra.mxu0 0
        %699 = vmatprep.subr.bf16.mxu0 0
        %700 = vmatpush1.bf16.msra.mxu0 0
        %701 = vmatprep.subr.bf16.mxu0 0
        %702 = vmatpush1.bf16.msra.mxu0 0
        %703 = vmatprep.subr.bf16.mxu0 0
        %704 = vmatpush1.bf16.msra.mxu0 0
        %705 = vmatprep.subr.bf16.mxu0 0
        %706 = vmatpush1.bf16.msra.mxu0 0
        %707 = vmatprep.subr.bf16.mxu0 0
        %708 = vmatpush1.bf16.msra.mxu0 0
        %709 = vmatprep.subr.bf16.mxu0 0
        %710 = vmatpush1.bf16.msra.mxu0 0
        %711 = vmatprep.subr.bf16.mxu0 0
        %712 = vmatpush1.bf16.msra.mxu0 0
        %713 = vmatprep.subr.bf16.mxu0 0
        %714 = vmatpush1.bf16.msra.mxu0 0
        %715 = vmatprep.subr.bf16.mxu0 0
        %716 = vmatpush1.bf16.msra.mxu0 0
        %717 = vmatprep.subr.bf16.mxu0 0
        %718 = vmatpush1.bf16.msra.mxu0 0
        %719 = vmatprep.mubr.bf16.mxu0 0
        %720 = vmatmul.mubr.bf16.gmra.mrb[0].mxu0 %v407
        %v721 = vpop.f32.mrb[0].mxu0
        %v722 = vadd.f32 %v674, %v721
        %v723 = vpop.f32.mrb[0].mxu0
        %v724 = vadd.f32 %v678, %v723
        %v725 = vpop.f32.mrb[0].mxu0
        %v726 = vpop.f32.mrb[0].mxu0
        %727 = vdwg.mxu0
        %v730 = vcombine.low %v722, %v724
        %v732 = vunpack.c.l.s4 1966171168
        %v733 = vunpack.c.0.s8 %v732
        %v734 = vlaneseq
        %v735 = vshrl.u32 %v734, 7
        %v736 = vsub.s32 %v733, %v735
        %v737 = vrot.slane %v730, %v736
        %v739 = vunpack.c.l.s4 1966171168
        %v740 = vunpack.c.0.s8 %v739
        %v741 = vlaneseq
        %v742 = vshrl.u32 %v741, 7
        %v743 = vsub.s32 %v740, %v742
        %v744 = vrot.slane %v737, %v743
        %s746 = scalar_lea.vmem %s174, 2 [#allocation7]
        %747 = vst.msk [vmem:[%s746] sm:$0x3] %vm478, %v744
        %s748 = scalar_lea.vmem %s150, 4 [#allocation2]
        %v749 = vld [vmem:[%s748] sm:$0x3]
        %v750 = vld [vmem:[#allocation5] sm:$0xff]
        %v751 = vld [vmem:[#allocation5 + $0x8] sm:$0xff]
        %v752 = vld [vmem:[#allocation5 + $0x10] sm:$0xff]
        %v753 = vld [vmem:[#allocation5 + $0x18] sm:$0xff]
        %v754 = vld [vmem:[#allocation5 + $0x20] sm:$0xff]
        %v755 = vld [vmem:[#allocation5 + $0x28] sm:$0xff]
        %v756 = vld [vmem:[#allocation5 + $0x30] sm:$0x3f]
        %v757 = vld [vmem:[#allocation5 + $0x38] sm:$0x3f]
        %v758 = vld [vmem:[#allocation5 + $0x40] sm:$0xff]
        %v759 = vld [vmem:[#allocation5 + $0x48] sm:$0xff]
        %v760 = vld [vmem:[#allocation5 + $0x50] sm:$0xff]
        %v761 = vld [vmem:[#allocation5 + $0x58] sm:$0xff]
        %v762 = vld [vmem:[#allocation5 + $0x60] sm:$0xff]
        %v763 = vld [vmem:[#allocation5 + $0x68] sm:$0xff]
        %v764 = vld [vmem:[#allocation5 + $0x70] sm:$0x3f]
        %v765 = vld [vmem:[#allocation5 + $0x78] sm:$0x3f]
        %v766 = vld [vmem:[#allocation5 + $0x80] sm:$0xff]
        %v767 = vld [vmem:[#allocation5 + $0x88] sm:$0xff]
        %v768 = vld [vmem:[#allocation5 + $0x90] sm:$0xff]
        %v769 = vld [vmem:[#allocation5 + $0x98] sm:$0xff]
        %v770 = vld [vmem:[#allocation5 + $0xa0] sm:$0xf]
        %v771 = vld [vmem:[#allocation5 + $0xa8] sm:$0xf]
        %v772 = vld [vmem:[#allocation5 + $0xb0] sm:$0xff]
        %v773 = vld [vmem:[#allocation5 + $0xb8] sm:$0xff]
        %v774 = vld [vmem:[#allocation5 + $0xc0] sm:$0x3]
        %v775 = vld [vmem:[#allocation5 + $0xc8] sm:$0x3]
        %v776 = vld [vmem:[%s215] ss:$8 sm:$0x3]
        %v778 = vlaneseq
        %v779 = vshrl.u32 %v778, 7
        %v780 = vsub.s32 0, %v779
        %v781 = vrot.slane %v749, %v780
        %v782 = vlaneseq
        %v783 = vshrl.u32 %v782, 7
        %v784 = vsub.s32 1, %v783
        %v785 = vrot.slane %v749, %v784
        %v788 = vmul.f32 %v750, %v781
        %v789 = vmul.f32 %v751, %v785
        %v790 = vmul.f32 %v752, %v781
        %v791 = vmul.f32 %v753, %v785
        %v792 = vmul.f32 %v754, %v781
        %v793 = vmul.f32 %v755, %v785
        %v794 = vmul.f32 %v756, %v781
        %v795 = vmul.f32 %v757, %v785
        %v796 = vadd.f32 %v788, %v758
        %v797 = vadd.f32 %v789, %v759
        %v798 = vadd.f32 %v790, %v760
        %v799 = vadd.f32 %v791, %v761
        %v800 = vadd.f32 %v792, %v762
        %v801 = vadd.f32 %v793, %v763
        %v802 = vadd.f32 %v794, %v764
        %v803 = vadd.f32 %v795, %v765
        %v804 = vmax.f32 %v796, 0.0
        %v805 = vmax.f32 %v797, 0.0
        %v806 = vmax.f32 %v798, 0.0
        %v807 = vmax.f32 %v799, 0.0
        %v808 = vmax.f32 %v800, 0.0
        %v809 = vmax.f32 %v801, 0.0
        %v810 = vmax.f32 %v802, 0.0
        %v811 = vmax.f32 %v803, 0.0
        %v812 = vpack.c.bf16 %v806, %v804
        %v813 = vpack.c.bf16 %v807, %v805
        %v814 = vpack.c.bf16 %v810, %v808
        %v815 = vpack.c.bf16 %v811, %v809
        %v817 = vsel %vm263, %v814, 0
        %v820 = vsel %vm263, %v815, 0
        %822 = vmatprep.subr.bf16.mxu0 %v813
        %823 = vmatpush1.bf16.msra.mxu0 %v812
        %824 = vmatprep.subr.bf16.mxu0 %v820
        %825 = vmatpush1.bf16.msra.mxu0 %v817
        %826 = vmatprep.subr.bf16.mxu0 0
        %827 = vmatpush1.bf16.msra.mxu0 0
        %828 = vmatprep.subr.bf16.mxu0 0
        %829 = vmatpush1.bf16.msra.mxu0 0
        %830 = vmatprep.subr.bf16.mxu0 0
        %831 = vmatpush1.bf16.msra.mxu0 0
        %832 = vmatprep.subr.bf16.mxu0 0
        %833 = vmatpush1.bf16.msra.mxu0 0
        %834 = vmatprep.subr.bf16.mxu0 0
        %835 = vmatpush1.bf16.msra.mxu0 0
        %836 = vmatprep.subr.bf16.mxu0 0
        %837 = vmatpush1.bf16.msra.mxu0 0
        %838 = vmatprep.subr.bf16.mxu0 0
        %839 = vmatpush1.bf16.msra.mxu0 0
        %840 = vmatprep.subr.bf16.mxu0 0
        %841 = vmatpush1.bf16.msra.mxu0 0
        %842 = vmatprep.subr.bf16.mxu0 0
        %843 = vmatpush1.bf16.msra.mxu0 0
        %844 = vmatprep.subr.bf16.mxu0 0
        %845 = vmatpush1.bf16.msra.mxu0 0
        %846 = vmatprep.subr.bf16.mxu0 0
        %847 = vmatpush1.bf16.msra.mxu0 0
        %848 = vmatprep.subr.bf16.mxu0 0
        %849 = vmatpush1.bf16.msra.mxu0 0
        %850 = vmatprep.subr.bf16.mxu0 0
        %851 = vmatpush1.bf16.msra.mxu0 0
        %852 = vmatprep.subr.bf16.mxu0 0
        %853 = vmatpush1.bf16.msra.mxu0 0
        %854 = vmatprep.mubr.bf16.mxu0 0
        %855 = vmatmul.mubr.bf16.gmra.mrb[0].mxu0 %v258
        %v856 = vpop.f32.mrb[0].mxu0
        %v857 = vadd.f32 %v766, %v856
        %v858 = vpop.f32.mrb[0].mxu0
        %v859 = vadd.f32 %v767, %v858
        %v860 = vpop.f32.mrb[0].mxu0
        %v861 = vadd.f32 %v768, %v860
        %v862 = vpop.f32.mrb[0].mxu0
        %v863 = vadd.f32 %v769, %v862
        %864 = vmatprep.mubr.bf16.mxu0 0
        %865 = vmatmul.mubr.bf16.gmra.mrb[0].mxu0 %v261
        %v866 = vpop.f32.mrb[0].mxu0
        %v867 = vadd.f32 %v770, %v866
        %v868 = vpop.f32.mrb[0].mxu0
        %v869 = vadd.f32 %v771, %v868
        %v870 = vpop.f32.mrb[0].mxu0
        %v871 = vpop.f32.mrb[0].mxu0
        %872 = vdwg.mxu0
        %v873 = vmax.f32 %v857, 0.0
        %v874 = vmax.f32 %v859, 0.0
        %v875 = vmax.f32 %v861, 0.0
        %v876 = vmax.f32 %v863, 0.0
        %v877 = vmax.f32 %v867, 0.0
        %v878 = vmax.f32 %v869, 0.0
        %v879 = vpack.c.bf16 %v875, %v873
        %v880 = vpack.c.bf16 %v876, %v874
        %v881 = vpack.c.bf16 %v877, %v877
        %v882 = vpack.c.bf16 %v878, %v878
        %v884 = vsel %vm335, %v881, 0
        %v887 = vsel %vm335, %v882, 0
        %889 = vmatprep.subr.bf16.mxu0 %v880
        %890 = vmatpush1.bf16.msra.mxu0 %v879
        %891 = vmatprep.subr.bf16.mxu0 %v887
        %892 = vmatpush1.bf16.msra.mxu0 %v884
        %893 = vmatprep.subr.bf16.mxu0 0
        %894 = vmatpush1.bf16.msra.mxu0 0
        %895 = vmatprep.subr.bf16.mxu0 0
        %896 = vmatpush1.bf16.msra.mxu0 0
        %897 = vmatprep.subr.bf16.mxu0 0
        %898 = vmatpush1.bf16.msra.mxu0 0
        %899 = vmatprep.subr.bf16.mxu0 0
        %900 = vmatpush1.bf16.msra.mxu0 0
        %901 = vmatprep.subr.bf16.mxu0 0
        %902 = vmatpush1.bf16.msra.mxu0 0
        %903 = vmatprep.subr.bf16.mxu0 0
        %904 = vmatpush1.bf16.msra.mxu0 0
        %905 = vmatprep.subr.bf16.mxu0 0
        %906 = vmatpush1.bf16.msra.mxu0 0
        %907 = vmatprep.subr.bf16.mxu0 0
        %908 = vmatpush1.bf16.msra.mxu0 0
        %909 = vmatprep.subr.bf16.mxu0 0
        %910 = vmatpush1.bf16.msra.mxu0 0
        %911 = vmatprep.subr.bf16.mxu0 0
        %912 = vmatpush1.bf16.msra.mxu0 0
        %913 = vmatprep.subr.bf16.mxu0 0
        %914 = vmatpush1.bf16.msra.mxu0 0
        %915 = vmatprep.subr.bf16.mxu0 0
        %916 = vmatpush1.bf16.msra.mxu0 0
        %917 = vmatprep.subr.bf16.mxu0 0
        %918 = vmatpush1.bf16.msra.mxu0 0
        %919 = vmatprep.subr.bf16.mxu0 0
        %920 = vmatpush1.bf16.msra.mxu0 0
        %921 = vmatprep.mubr.bf16.mxu0 0
        %922 = vmatmul.mubr.bf16.gmra.mrb[0].mxu0 %v333
        %v923 = vpop.f32.mrb[0].mxu0
        %v924 = vadd.f32 %v772, %v923
        %v925 = vpop.f32.mrb[0].mxu0
        %v926 = vadd.f32 %v773, %v925
        %v927 = vpop.f32.mrb[0].mxu0
        %v928 = vadd.f32 %v774, %v927
        %v929 = vpop.f32.mrb[0].mxu0
        %v930 = vadd.f32 %v775, %v929
        %931 = vdwg.mxu0
        %v932 = vmax.f32 %v924, 0.0
        %v933 = vmax.f32 %v926, 0.0
        %v934 = vmax.f32 %v928, 0.0
        %v935 = vmax.f32 %v930, 0.0
        %v936 = vpack.c.bf16 %v934, %v932
        %v937 = vpack.c.bf16 %v935, %v933
        %v939 = vlaneseq
        %v940 = vshrl.u32 %v939, 7
        %v941 = vsub.s32 0, %v940
        %v942 = vrot.slane %v776, %v941
        %v943 = vlaneseq
        %v944 = vshrl.u32 %v943, 7
        %v945 = vsub.s32 1, %v944
        %v946 = vrot.slane %v776, %v945
        %v950 = vsel %vm409, %v936, 0
        %v953 = vsel %vm409, %v937, 0
        %955 = vmatprep.subr.bf16.mxu0 %v953
        %956 = vmatpush1.bf16.msra.mxu0 %v950
        %957 = vmatprep.subr.bf16.mxu0 0
        %958 = vmatpush1.bf16.msra.mxu0 0
        %959 = vmatprep.subr.bf16.mxu0 0
        %960 = vmatpush1.bf16.msra.mxu0 0
        %961 = vmatprep.subr.bf16.mxu0 0
        %962 = vmatpush1.bf16.msra.mxu0 0
        %963 = vmatprep.subr.bf16.mxu0 0
        %964 = vmatpush1.bf16.msra.mxu0 0
        %965 = vmatprep.subr.bf16.mxu0 0
        %966 = vmatpush1.bf16.msra.mxu0 0
        %967 = vmatprep.subr.bf16.mxu0 0
        %968 = vmatpush1.bf16.msra.mxu0 0
        %969 = vmatprep.subr.bf16.mxu0 0
        %970 = vmatpush1.bf16.msra.mxu0 0
        %971 = vmatprep.subr.bf16.mxu0 0
        %972 = vmatpush1.bf16.msra.mxu0 0
        %973 = vmatprep.subr.bf16.mxu0 0
        %974 = vmatpush1.bf16.msra.mxu0 0
        %975 = vmatprep.subr.bf16.mxu0 0
        %976 = vmatpush1.bf16.msra.mxu0 0
        %977 = vmatprep.subr.bf16.mxu0 0
        %978 = vmatpush1.bf16.msra.mxu0 0
        %979 = vmatprep.subr.bf16.mxu0 0
        %980 = vmatpush1.bf16.msra.mxu0 0
        %981 = vmatprep.subr.bf16.mxu0 0
        %982 = vmatpush1.bf16.msra.mxu0 0
        %983 = vmatprep.subr.bf16.mxu0 0
        %984 = vmatpush1.bf16.msra.mxu0 0
        %985 = vmatprep.subr.bf16.mxu0 0
        %986 = vmatpush1.bf16.msra.mxu0 0
        %987 = vmatprep.mubr.bf16.mxu0 0
        %988 = vmatmul.mubr.bf16.gmra.mrb[0].mxu0 %v407
        %v989 = vpop.f32.mrb[0].mxu0
        %v990 = vadd.f32 %v942, %v989
        %v991 = vpop.f32.mrb[0].mxu0
        %v992 = vadd.f32 %v946, %v991
        %v993 = vpop.f32.mrb[0].mxu0
        %v994 = vpop.f32.mrb[0].mxu0
        %995 = vdwg.mxu0
        %v998 = vcombine.low %v990, %v992
        %v1000 = vunpack.c.l.s4 1966171168
        %v1001 = vunpack.c.0.s8 %v1000
        %v1002 = vlaneseq
        %v1003 = vshrl.u32 %v1002, 7
        %v1004 = vsub.s32 %v1001, %v1003
        %v1005 = vrot.slane %v998, %v1004
        %v1007 = vunpack.c.l.s4 1966171168
        %v1008 = vunpack.c.0.s8 %v1007
        %v1009 = vlaneseq
        %v1010 = vshrl.u32 %v1009, 7
        %v1011 = vsub.s32 %v1008, %v1010
        %v1012 = vrot.slane %v1005, %v1011
        %s1014 = scalar_lea.vmem %s174, 4 [#allocation7]
        %1015 = vst.msk [vmem:[%s1014] sm:$0x3] %vm478, %v1012
        %s1016 = scalar_lea.vmem %s150, 6 [#allocation2]
        %v1017 = vld [vmem:[%s1016] sm:$0x3]
        %v1018 = vld [vmem:[#allocation5] sm:$0xff]
        %v1019 = vld [vmem:[#allocation5 + $0x8] sm:$0xff]
        %v1020 = vld [vmem:[#allocation5 + $0x10] sm:$0xff]
        %v1021 = vld [vmem:[#allocation5 + $0x18] sm:$0xff]
        %v1022 = vld [vmem:[#allocation5 + $0x20] sm:$0xff]
        %v1023 = vld [vmem:[#allocation5 + $0x28] sm:$0xff]
        %v1024 = vld [vmem:[#allocation5 + $0x30] sm:$0x3f]
        %v1025 = vld [vmem:[#allocation5 + $0x38] sm:$0x3f]
        %v1026 = vld [vmem:[#allocation5 + $0x40] sm:$0xff]
        %v1027 = vld [vmem:[#allocation5 + $0x48] sm:$0xff]
        %v1028 = vld [vmem:[#allocation5 + $0x50] sm:$0xff]
        %v1029 = vld [vmem:[#allocation5 + $0x58] sm:$0xff]
        %v1030 = vld [vmem:[#allocation5 + $0x60] sm:$0xff]
        %v1031 = vld [vmem:[#allocation5 + $0x68] sm:$0xff]
        %v1032 = vld [vmem:[#allocation5 + $0x70] sm:$0x3f]
        %v1033 = vld [vmem:[#allocation5 + $0x78] sm:$0x3f]
        %v1034 = vld [vmem:[#allocation5 + $0x80] sm:$0xff]
        %v1035 = vld [vmem:[#allocation5 + $0x88] sm:$0xff]
        %v1036 = vld [vmem:[#allocation5 + $0x90] sm:$0xff]
        %v1037 = vld [vmem:[#allocation5 + $0x98] sm:$0xff]
        %v1038 = vld [vmem:[#allocation5 + $0xa0] sm:$0xf]
        %v1039 = vld [vmem:[#allocation5 + $0xa8] sm:$0xf]
        %v1040 = vld [vmem:[#allocation5 + $0xb0] sm:$0xff]
        %v1041 = vld [vmem:[#allocation5 + $0xb8] sm:$0xff]
        %v1042 = vld [vmem:[#allocation5 + $0xc0] sm:$0x3]
        %v1043 = vld [vmem:[#allocation5 + $0xc8] sm:$0x3]
        %v1044 = vld [vmem:[%s215] ss:$8 sm:$0x3]
        %v1046 = vlaneseq
        %v1047 = vshrl.u32 %v1046, 7
        %v1048 = vsub.s32 0, %v1047
        %v1049 = vrot.slane %v1017, %v1048
        %v1050 = vlaneseq
        %v1051 = vshrl.u32 %v1050, 7
        %v1052 = vsub.s32 1, %v1051
        %v1053 = vrot.slane %v1017, %v1052
        %v1056 = vmul.f32 %v1018, %v1049
        %v1057 = vmul.f32 %v1019, %v1053
        %v1058 = vmul.f32 %v1020, %v1049
        %v1059 = vmul.f32 %v1021, %v1053
        %v1060 = vmul.f32 %v1022, %v1049
        %v1061 = vmul.f32 %v1023, %v1053
        %v1062 = vmul.f32 %v1024, %v1049
        %v1063 = vmul.f32 %v1025, %v1053
        %v1064 = vadd.f32 %v1056, %v1026
        %v1065 = vadd.f32 %v1057, %v1027
        %v1066 = vadd.f32 %v1058, %v1028
        %v1067 = vadd.f32 %v1059, %v1029
        %v1068 = vadd.f32 %v1060, %v1030
        %v1069 = vadd.f32 %v1061, %v1031
        %v1070 = vadd.f32 %v1062, %v1032
        %v1071 = vadd.f32 %v1063, %v1033
        %v1072 = vmax.f32 %v1064, 0.0
        %v1073 = vmax.f32 %v1065, 0.0
        %v1074 = vmax.f32 %v1066, 0.0
        %v1075 = vmax.f32 %v1067, 0.0
        %v1076 = vmax.f32 %v1068, 0.0
        %v1077 = vmax.f32 %v1069, 0.0
        %v1078 = vmax.f32 %v1070, 0.0
        %v1079 = vmax.f32 %v1071, 0.0
        %v1080 = vpack.c.bf16 %v1074, %v1072
        %v1081 = vpack.c.bf16 %v1075, %v1073
        %v1082 = vpack.c.bf16 %v1078, %v1076
        %v1083 = vpack.c.bf16 %v1079, %v1077
        %v1085 = vsel %vm263, %v1082, 0
        %v1088 = vsel %vm263, %v1083, 0
        %1090 = vmatprep.subr.bf16.mxu0 %v1081
        %1091 = vmatpush1.bf16.msra.mxu0 %v1080
        %1092 = vmatprep.subr.bf16.mxu0 %v1088
        %1093 = vmatpush1.bf16.msra.mxu0 %v1085
        %1094 = vmatprep.subr.bf16.mxu0 0
        %1095 = vmatpush1.bf16.msra.mxu0 0
        %1096 = vmatprep.subr.bf16.mxu0 0
        %1097 = vmatpush1.bf16.msra.mxu0 0
        %1098 = vmatprep.subr.bf16.mxu0 0
        %1099 = vmatpush1.bf16.msra.mxu0 0
        %1100 = vmatprep.subr.bf16.mxu0 0
        %1101 = vmatpush1.bf16.msra.mxu0 0
        %1102 = vmatprep.subr.bf16.mxu0 0
        %1103 = vmatpush1.bf16.msra.mxu0 0
        %1104 = vmatprep.subr.bf16.mxu0 0
        %1105 = vmatpush1.bf16.msra.mxu0 0
        %1106 = vmatprep.subr.bf16.mxu0 0
        %1107 = vmatpush1.bf16.msra.mxu0 0
        %1108 = vmatprep.subr.bf16.mxu0 0
        %1109 = vmatpush1.bf16.msra.mxu0 0
        %1110 = vmatprep.subr.bf16.mxu0 0
        %1111 = vmatpush1.bf16.msra.mxu0 0
        %1112 = vmatprep.subr.bf16.mxu0 0
        %1113 = vmatpush1.bf16.msra.mxu0 0
        %1114 = vmatprep.subr.bf16.mxu0 0
        %1115 = vmatpush1.bf16.msra.mxu0 0
        %1116 = vmatprep.subr.bf16.mxu0 0
        %1117 = vmatpush1.bf16.msra.mxu0 0
        %1118 = vmatprep.subr.bf16.mxu0 0
        %1119 = vmatpush1.bf16.msra.mxu0 0
        %1120 = vmatprep.subr.bf16.mxu0 0
        %1121 = vmatpush1.bf16.msra.mxu0 0
        %1122 = vmatprep.mubr.bf16.mxu0 0
        %1123 = vmatmul.mubr.bf16.gmra.mrb[0].mxu0 %v258
        %v1124 = vpop.f32.mrb[0].mxu0
        %v1125 = vadd.f32 %v1034, %v1124
        %v1126 = vpop.f32.mrb[0].mxu0
        %v1127 = vadd.f32 %v1035, %v1126
        %v1128 = vpop.f32.mrb[0].mxu0
        %v1129 = vadd.f32 %v1036, %v1128
        %v1130 = vpop.f32.mrb[0].mxu0
        %v1131 = vadd.f32 %v1037, %v1130
        %1132 = vmatprep.mubr.bf16.mxu0 0
        %1133 = vmatmul.mubr.bf16.gmra.mrb[0].mxu0 %v261
        %v1134 = vpop.f32.mrb[0].mxu0
        %v1135 = vadd.f32 %v1038, %v1134
        %v1136 = vpop.f32.mrb[0].mxu0
        %v1137 = vadd.f32 %v1039, %v1136
        %v1138 = vpop.f32.mrb[0].mxu0
        %v1139 = vpop.f32.mrb[0].mxu0
        %1140 = vdwg.mxu0
        %v1141 = vmax.f32 %v1125, 0.0
        %v1142 = vmax.f32 %v1127, 0.0
        %v1143 = vmax.f32 %v1129, 0.0
        %v1144 = vmax.f32 %v1131, 0.0
        %v1145 = vmax.f32 %v1135, 0.0
        %v1146 = vmax.f32 %v1137, 0.0
        %v1147 = vpack.c.bf16 %v1143, %v1141
        %v1148 = vpack.c.bf16 %v1144, %v1142
        %v1149 = vpack.c.bf16 %v1145, %v1145
        %v1150 = vpack.c.bf16 %v1146, %v1146
        %v1152 = vsel %vm335, %v1149, 0
        %v1155 = vsel %vm335, %v1150, 0
        %1157 = vmatprep.subr.bf16.mxu0 %v1148
        %1158 = vmatpush1.bf16.msra.mxu0 %v1147
        %1159 = vmatprep.subr.bf16.mxu0 %v1155
        %1160 = vmatpush1.bf16.msra.mxu0 %v1152
        %1161 = vmatprep.subr.bf16.mxu0 0
        %1162 = vmatpush1.bf16.msra.mxu0 0
        %1163 = vmatprep.subr.bf16.mxu0 0
        %1164 = vmatpush1.bf16.msra.mxu0 0
        %1165 = vmatprep.subr.bf16.mxu0 0
        %1166 = vmatpush1.bf16.msra.mxu0 0
        %1167 = vmatprep.subr.bf16.mxu0 0
        %1168 = vmatpush1.bf16.msra.mxu0 0
        %1169 = vmatprep.subr.bf16.mxu0 0
        %1170 = vmatpush1.bf16.msra.mxu0 0
        %1171 = vmatprep.subr.bf16.mxu0 0
        %1172 = vmatpush1.bf16.msra.mxu0 0
        %1173 = vmatprep.subr.bf16.mxu0 0
        %1174 = vmatpush1.bf16.msra.mxu0 0
        %1175 = vmatprep.subr.bf16.mxu0 0
        %1176 = vmatpush1.bf16.msra.mxu0 0
        %1177 = vmatprep.subr.bf16.mxu0 0
        %1178 = vmatpush1.bf16.msra.mxu0 0
        %1179 = vmatprep.subr.bf16.mxu0 0
        %1180 = vmatpush1.bf16.msra.mxu0 0
        %1181 = vmatprep.subr.bf16.mxu0 0
        %1182 = vmatpush1.bf16.msra.mxu0 0
        %1183 = vmatprep.subr.bf16.mxu0 0
        %1184 = vmatpush1.bf16.msra.mxu0 0
        %1185 = vmatprep.subr.bf16.mxu0 0
        %1186 = vmatpush1.bf16.msra.mxu0 0
        %1187 = vmatprep.subr.bf16.mxu0 0
        %1188 = vmatpush1.bf16.msra.mxu0 0
        %1189 = vmatprep.mubr.bf16.mxu0 0
        %1190 = vmatmul.mubr.bf16.gmra.mrb[0].mxu0 %v333
        %v1191 = vpop.f32.mrb[0].mxu0
        %v1192 = vadd.f32 %v1040, %v1191
        %v1193 = vpop.f32.mrb[0].mxu0
        %v1194 = vadd.f32 %v1041, %v1193
        %v1195 = vpop.f32.mrb[0].mxu0
        %v1196 = vadd.f32 %v1042, %v1195
        %v1197 = vpop.f32.mrb[0].mxu0
        %v1198 = vadd.f32 %v1043, %v1197
        %1199 = vdwg.mxu0
        %v1200 = vmax.f32 %v1192, 0.0
        %v1201 = vmax.f32 %v1194, 0.0
        %v1202 = vmax.f32 %v1196, 0.0
        %v1203 = vmax.f32 %v1198, 0.0
        %v1204 = vpack.c.bf16 %v1202, %v1200
        %v1205 = vpack.c.bf16 %v1203, %v1201
        %v1207 = vlaneseq
        %v1208 = vshrl.u32 %v1207, 7
        %v1209 = vsub.s32 0, %v1208
        %v1210 = vrot.slane %v1044, %v1209
        %v1211 = vlaneseq
        %v1212 = vshrl.u32 %v1211, 7
        %v1213 = vsub.s32 1, %v1212
        %v1214 = vrot.slane %v1044, %v1213
        %v1218 = vsel %vm409, %v1204, 0
        %v1221 = vsel %vm409, %v1205, 0
        %1223 = vmatprep.subr.bf16.mxu0 %v1221
        %1224 = vmatpush1.bf16.msra.mxu0 %v1218
        %1225 = vmatprep.subr.bf16.mxu0 0
        %1226 = vmatpush1.bf16.msra.mxu0 0
        %1227 = vmatprep.subr.bf16.mxu0 0
        %1228 = vmatpush1.bf16.msra.mxu0 0
        %1229 = vmatprep.subr.bf16.mxu0 0
        %1230 = vmatpush1.bf16.msra.mxu0 0
        %1231 = vmatprep.subr.bf16.mxu0 0
        %1232 = vmatpush1.bf16.msra.mxu0 0
        %1233 = vmatprep.subr.bf16.mxu0 0
        %1234 = vmatpush1.bf16.msra.mxu0 0
        %1235 = vmatprep.subr.bf16.mxu0 0
        %1236 = vmatpush1.bf16.msra.mxu0 0
        %1237 = vmatprep.subr.bf16.mxu0 0
        %1238 = vmatpush1.bf16.msra.mxu0 0
        %1239 = vmatprep.subr.bf16.mxu0 0
        %1240 = vmatpush1.bf16.msra.mxu0 0
        %1241 = vmatprep.subr.bf16.mxu0 0
        %1242 = vmatpush1.bf16.msra.mxu0 0
        %1243 = vmatprep.subr.bf16.mxu0 0
        %1244 = vmatpush1.bf16.msra.mxu0 0
        %1245 = vmatprep.subr.bf16.mxu0 0
        %1246 = vmatpush1.bf16.msra.mxu0 0
        %1247 = vmatprep.subr.bf16.mxu0 0
        %1248 = vmatpush1.bf16.msra.mxu0 0
        %1249 = vmatprep.subr.bf16.mxu0 0
        %1250 = vmatpush1.bf16.msra.mxu0 0
        %1251 = vmatprep.subr.bf16.mxu0 0
        %1252 = vmatpush1.bf16.msra.mxu0 0
        %1253 = vmatprep.subr.bf16.mxu0 0
        %1254 = vmatpush1.bf16.msra.mxu0 0
        %1255 = vmatprep.mubr.bf16.mxu0 0
        %1256 = vmatmul.mubr.bf16.gmra.mrb[0].mxu0 %v407
        %v1257 = vpop.f32.mrb[0].mxu0
        %v1258 = vadd.f32 %v1210, %v1257
        %v1259 = vpop.f32.mrb[0].mxu0
        %v1260 = vadd.f32 %v1214, %v1259
        %v1261 = vpop.f32.mrb[0].mxu0
        %v1262 = vpop.f32.mrb[0].mxu0
        %1263 = vdwg.mxu0
        %v1266 = vcombine.low %v1258, %v1260
        %v1268 = vunpack.c.l.s4 1966171168
        %v1269 = vunpack.c.0.s8 %v1268
        %v1270 = vlaneseq
        %v1271 = vshrl.u32 %v1270, 7
        %v1272 = vsub.s32 %v1269, %v1271
        %v1273 = vrot.slane %v1266, %v1272
        %v1275 = vunpack.c.l.s4 1966171168
        %v1276 = vunpack.c.0.s8 %v1275
        %v1277 = vlaneseq
        %v1278 = vshrl.u32 %v1277, 7
        %v1279 = vsub.s32 %v1276, %v1278
        %v1280 = vrot.slane %v1273, %v1279
        %s1282 = scalar_lea.vmem %s174, 6 [#allocation7]
        %1283 = vst.msk [vmem:[%s1282] sm:$0x3] %vm478, %v1280
        %s1284 = scalar_lea.vmem %s150, 8 [#allocation2]
        %v1285 = vld [vmem:[%s1284] sm:$0x3]
        %v1286 = vld [vmem:[#allocation5] sm:$0xff]
        %v1287 = vld [vmem:[#allocation5 + $0x8] sm:$0xff]
        %v1288 = vld [vmem:[#allocation5 + $0x10] sm:$0xff]
        %v1289 = vld [vmem:[#allocation5 + $0x18] sm:$0xff]
        %v1290 = vld [vmem:[#allocation5 + $0x20] sm:$0xff]
        %v1291 = vld [vmem:[#allocation5 + $0x28] sm:$0xff]
        %v1292 = vld [vmem:[#allocation5 + $0x30] sm:$0x3f]
        %v1293 = vld [vmem:[#allocation5 + $0x38] sm:$0x3f]
        %v1294 = vld [vmem:[#allocation5 + $0x40] sm:$0xff]
        %v1295 = vld [vmem:[#allocation5 + $0x48] sm:$0xff]
        %v1296 = vld [vmem:[#allocation5 + $0x50] sm:$0xff]
        %v1297 = vld [vmem:[#allocation5 + $0x58] sm:$0xff]
        %v1298 = vld [vmem:[#allocation5 + $0x60] sm:$0xff]
        %v1299 = vld [vmem:[#allocation5 + $0x68] sm:$0xff]
        %v1300 = vld [vmem:[#allocation5 + $0x70] sm:$0x3f]
        %v1301 = vld [vmem:[#allocation5 + $0x78] sm:$0x3f]
        %v1302 = vld [vmem:[#allocation5 + $0x80] sm:$0xff]
        %v1303 = vld [vmem:[#allocation5 + $0x88] sm:$0xff]
        %v1304 = vld [vmem:[#allocation5 + $0x90] sm:$0xff]
        %v1305 = vld [vmem:[#allocation5 + $0x98] sm:$0xff]
        %v1306 = vld [vmem:[#allocation5 + $0xa0] sm:$0xf]
        %v1307 = vld [vmem:[#allocation5 + $0xa8] sm:$0xf]
        %v1308 = vld [vmem:[#allocation5 + $0xb0] sm:$0xff]
        %v1309 = vld [vmem:[#allocation5 + $0xb8] sm:$0xff]
        %v1310 = vld [vmem:[#allocation5 + $0xc0] sm:$0x3]
        %v1311 = vld [vmem:[#allocation5 + $0xc8] sm:$0x3]
        %v1312 = vld [vmem:[%s215] ss:$8 sm:$0x3]
        %v1314 = vlaneseq
        %v1315 = vshrl.u32 %v1314, 7
        %v1316 = vsub.s32 0, %v1315
        %v1317 = vrot.slane %v1285, %v1316
        %v1318 = vlaneseq
        %v1319 = vshrl.u32 %v1318, 7
        %v1320 = vsub.s32 1, %v1319
        %v1321 = vrot.slane %v1285, %v1320
        %v1324 = vmul.f32 %v1286, %v1317
        %v1325 = vmul.f32 %v1287, %v1321
        %v1326 = vmul.f32 %v1288, %v1317
        %v1327 = vmul.f32 %v1289, %v1321
        %v1328 = vmul.f32 %v1290, %v1317
        %v1329 = vmul.f32 %v1291, %v1321
        %v1330 = vmul.f32 %v1292, %v1317
        %v1331 = vmul.f32 %v1293, %v1321
        %v1332 = vadd.f32 %v1324, %v1294
        %v1333 = vadd.f32 %v1325, %v1295
        %v1334 = vadd.f32 %v1326, %v1296
        %v1335 = vadd.f32 %v1327, %v1297
        %v1336 = vadd.f32 %v1328, %v1298
        %v1337 = vadd.f32 %v1329, %v1299
        %v1338 = vadd.f32 %v1330, %v1300
        %v1339 = vadd.f32 %v1331, %v1301
        %v1340 = vmax.f32 %v1332, 0.0
        %v1341 = vmax.f32 %v1333, 0.0
        %v1342 = vmax.f32 %v1334, 0.0
        %v1343 = vmax.f32 %v1335, 0.0
        %v1344 = vmax.f32 %v1336, 0.0
        %v1345 = vmax.f32 %v1337, 0.0
        %v1346 = vmax.f32 %v1338, 0.0
        %v1347 = vmax.f32 %v1339, 0.0
        %v1348 = vpack.c.bf16 %v1342, %v1340
        %v1349 = vpack.c.bf16 %v1343, %v1341
        %v1350 = vpack.c.bf16 %v1346, %v1344
        %v1351 = vpack.c.bf16 %v1347, %v1345
        %v1353 = vsel %vm263, %v1350, 0
        %v1356 = vsel %vm263, %v1351, 0
        %1358 = vmatprep.subr.bf16.mxu0 %v1349
        %1359 = vmatpush1.bf16.msra.mxu0 %v1348
        %1360 = vmatprep.subr.bf16.mxu0 %v1356
        %1361 = vmatpush1.bf16.msra.mxu0 %v1353
        %1362 = vmatprep.subr.bf16.mxu0 0
        %1363 = vmatpush1.bf16.msra.mxu0 0
        %1364 = vmatprep.subr.bf16.mxu0 0
        %1365 = vmatpush1.bf16.msra.mxu0 0
        %1366 = vmatprep.subr.bf16.mxu0 0
        %1367 = vmatpush1.bf16.msra.mxu0 0
        %1368 = vmatprep.subr.bf16.mxu0 0
        %1369 = vmatpush1.bf16.msra.mxu0 0
        %1370 = vmatprep.subr.bf16.mxu0 0
        %1371 = vmatpush1.bf16.msra.mxu0 0
        %1372 = vmatprep.subr.bf16.mxu0 0
        %1373 = vmatpush1.bf16.msra.mxu0 0
        %1374 = vmatprep.subr.bf16.mxu0 0
        %1375 = vmatpush1.bf16.msra.mxu0 0
        %1376 = vmatprep.subr.bf16.mxu0 0
        %1377 = vmatpush1.bf16.msra.mxu0 0
        %1378 = vmatprep.subr.bf16.mxu0 0
        %1379 = vmatpush1.bf16.msra.mxu0 0
        %1380 = vmatprep.subr.bf16.mxu0 0
        %1381 = vmatpush1.bf16.msra.mxu0 0
        %1382 = vmatprep.subr.bf16.mxu0 0
        %1383 = vmatpush1.bf16.msra.mxu0 0
        %1384 = vmatprep.subr.bf16.mxu0 0
        %1385 = vmatpush1.bf16.msra.mxu0 0
        %1386 = vmatprep.subr.bf16.mxu0 0
        %1387 = vmatpush1.bf16.msra.mxu0 0
        %1388 = vmatprep.subr.bf16.mxu0 0
        %1389 = vmatpush1.bf16.msra.mxu0 0
        %1390 = vmatprep.mubr.bf16.mxu0 0
        %1391 = vmatmul.mubr.bf16.gmra.mrb[0].mxu0 %v258
        %v1392 = vpop.f32.mrb[0].mxu0
        %v1393 = vadd.f32 %v1302, %v1392
        %v1394 = vpop.f32.mrb[0].mxu0
        %v1395 = vadd.f32 %v1303, %v1394
        %v1396 = vpop.f32.mrb[0].mxu0
        %v1397 = vadd.f32 %v1304, %v1396
        %v1398 = vpop.f32.mrb[0].mxu0
        %v1399 = vadd.f32 %v1305, %v1398
        %1400 = vmatprep.mubr.bf16.mxu0 0
        %1401 = vmatmul.mubr.bf16.gmra.mrb[0].mxu0 %v261
        %v1402 = vpop.f32.mrb[0].mxu0
        %v1403 = vadd.f32 %v1306, %v1402
        %v1404 = vpop.f32.mrb[0].mxu0
        %v1405 = vadd.f32 %v1307, %v1404
        %v1406 = vpop.f32.mrb[0].mxu0
        %v1407 = vpop.f32.mrb[0].mxu0
        %1408 = vdwg.mxu0
        %v1409 = vmax.f32 %v1393, 0.0
        %v1410 = vmax.f32 %v1395, 0.0
        %v1411 = vmax.f32 %v1397, 0.0
        %v1412 = vmax.f32 %v1399, 0.0
        %v1413 = vmax.f32 %v1403, 0.0
        %v1414 = vmax.f32 %v1405, 0.0
        %v1415 = vpack.c.bf16 %v1411, %v1409
        %v1416 = vpack.c.bf16 %v1412, %v1410
        %v1417 = vpack.c.bf16 %v1413, %v1413
        %v1418 = vpack.c.bf16 %v1414, %v1414
        %v1420 = vsel %vm335, %v1417, 0
        %v1423 = vsel %vm335, %v1418, 0
        %1425 = vmatprep.subr.bf16.mxu0 %v1416
        %1426 = vmatpush1.bf16.msra.mxu0 %v1415
        %1427 = vmatprep.subr.bf16.mxu0 %v1423
        %1428 = vmatpush1.bf16.msra.mxu0 %v1420
        %1429 = vmatprep.subr.bf16.mxu0 0
        %1430 = vmatpush1.bf16.msra.mxu0 0
        %1431 = vmatprep.subr.bf16.mxu0 0
        %1432 = vmatpush1.bf16.msra.mxu0 0
        %1433 = vmatprep.subr.bf16.mxu0 0
        %1434 = vmatpush1.bf16.msra.mxu0 0
        %1435 = vmatprep.subr.bf16.mxu0 0
        %1436 = vmatpush1.bf16.msra.mxu0 0
        %1437 = vmatprep.subr.bf16.mxu0 0
        %1438 = vmatpush1.bf16.msra.mxu0 0
        %1439 = vmatprep.subr.bf16.mxu0 0
        %1440 = vmatpush1.bf16.msra.mxu0 0
        %1441 = vmatprep.subr.bf16.mxu0 0
        %1442 = vmatpush1.bf16.msra.mxu0 0
        %1443 = vmatprep.subr.bf16.mxu0 0
        %1444 = vmatpush1.bf16.msra.mxu0 0
        %1445 = vmatprep.subr.bf16.mxu0 0
        %1446 = vmatpush1.bf16.msra.mxu0 0
        %1447 = vmatprep.subr.bf16.mxu0 0
        %1448 = vmatpush1.bf16.msra.mxu0 0
        %1449 = vmatprep.subr.bf16.mxu0 0
        %1450 = vmatpush1.bf16.msra.mxu0 0
        %1451 = vmatprep.subr.bf16.mxu0 0
        %1452 = vmatpush1.bf16.msra.mxu0 0
        %1453 = vmatprep.subr.bf16.mxu0 0
        %1454 = vmatpush1.bf16.msra.mxu0 0
        %1455 = vmatprep.subr.bf16.mxu0 0
        %1456 = vmatpush1.bf16.msra.mxu0 0
        %1457 = vmatprep.mubr.bf16.mxu0 0
        %1458 = vmatmul.mubr.bf16.gmra.mrb[0].mxu0 %v333
        %v1459 = vpop.f32.mrb[0].mxu0
        %v1460 = vadd.f32 %v1308, %v1459
        %v1461 = vpop.f32.mrb[0].mxu0
        %v1462 = vadd.f32 %v1309, %v1461
        %v1463 = vpop.f32.mrb[0].mxu0
        %v1464 = vadd.f32 %v1310, %v1463
        %v1465 = vpop.f32.mrb[0].mxu0
        %v1466 = vadd.f32 %v1311, %v1465
        %1467 = vdwg.mxu0
        %v1468 = vmax.f32 %v1460, 0.0
        %v1469 = vmax.f32 %v1462, 0.0
        %v1470 = vmax.f32 %v1464, 0.0
        %v1471 = vmax.f32 %v1466, 0.0
        %v1472 = vpack.c.bf16 %v1470, %v1468
        %v1473 = vpack.c.bf16 %v1471, %v1469
        %v1475 = vlaneseq
        %v1476 = vshrl.u32 %v1475, 7
        %v1477 = vsub.s32 0, %v1476
        %v1478 = vrot.slane %v1312, %v1477
        %v1479 = vlaneseq
        %v1480 = vshrl.u32 %v1479, 7
        %v1481 = vsub.s32 1, %v1480
        %v1482 = vrot.slane %v1312, %v1481
        %v1486 = vsel %vm409, %v1472, 0
        %v1489 = vsel %vm409, %v1473, 0
        %1491 = vmatprep.subr.bf16.mxu0 %v1489
        %1492 = vmatpush1.bf16.msra.mxu0 %v1486
        %1493 = vmatprep.subr.bf16.mxu0 0
        %1494 = vmatpush1.bf16.msra.mxu0 0
        %1495 = vmatprep.subr.bf16.mxu0 0
        %1496 = vmatpush1.bf16.msra.mxu0 0
        %1497 = vmatprep.subr.bf16.mxu0 0
        %1498 = vmatpush1.bf16.msra.mxu0 0
        %1499 = vmatprep.subr.bf16.mxu0 0
        %1500 = vmatpush1.bf16.msra.mxu0 0
        %1501 = vmatprep.subr.bf16.mxu0 0
        %1502 = vmatpush1.bf16.msra.mxu0 0
        %1503 = vmatprep.subr.bf16.mxu0 0
        %1504 = vmatpush1.bf16.msra.mxu0 0
        %1505 = vmatprep.subr.bf16.mxu0 0
        %1506 = vmatpush1.bf16.msra.mxu0 0
        %1507 = vmatprep.subr.bf16.mxu0 0
        %1508 = vmatpush1.bf16.msra.mxu0 0
        %1509 = vmatprep.subr.bf16.mxu0 0
        %1510 = vmatpush1.bf16.msra.mxu0 0
        %1511 = vmatprep.subr.bf16.mxu0 0
        %1512 = vmatpush1.bf16.msra.mxu0 0
        %1513 = vmatprep.subr.bf16.mxu0 0
        %1514 = vmatpush1.bf16.msra.mxu0 0
        %1515 = vmatprep.subr.bf16.mxu0 0
        %1516 = vmatpush1.bf16.msra.mxu0 0
        %1517 = vmatprep.subr.bf16.mxu0 0
        %1518 = vmatpush1.bf16.msra.mxu0 0
        %1519 = vmatprep.subr.bf16.mxu0 0
        %1520 = vmatpush1.bf16.msra.mxu0 0
        %1521 = vmatprep.subr.bf16.mxu0 0
        %1522 = vmatpush1.bf16.msra.mxu0 0
        %1523 = vmatprep.mubr.bf16.mxu0 0
        %1524 = vmatmul.mubr.bf16.gmra.mrb[0].mxu0 %v407
        %v1525 = vpop.f32.mrb[0].mxu0
        %v1526 = vadd.f32 %v1478, %v1525
        %v1527 = vpop.f32.mrb[0].mxu0
        %v1528 = vadd.f32 %v1482, %v1527
        %v1529 = vpop.f32.mrb[0].mxu0
        %v1530 = vpop.f32.mrb[0].mxu0
        %1531 = vdwg.mxu0
        %v1534 = vcombine.low %v1526, %v1528
        %v1536 = vunpack.c.l.s4 1966171168
        %v1537 = vunpack.c.0.s8 %v1536
        %v1538 = vlaneseq
        %v1539 = vshrl.u32 %v1538, 7
        %v1540 = vsub.s32 %v1537, %v1539
        %v1541 = vrot.slane %v1534, %v1540
        %v1543 = vunpack.c.l.s4 1966171168
        %v1544 = vunpack.c.0.s8 %v1543
        %v1545 = vlaneseq
        %v1546 = vshrl.u32 %v1545, 7
        %v1547 = vsub.s32 %v1544, %v1546
        %v1548 = vrot.slane %v1541, %v1547
        %s1550 = scalar_lea.vmem %s174, 8 [#allocation7]
        %1551 = vst.msk [vmem:[%s1550] sm:$0x3] %vm478, %v1548
        %s1552 = scalar_lea.vmem %s150, 10 [#allocation2]
        %v1553 = vld [vmem:[%s1552] sm:$0x3]
        %v1554 = vld [vmem:[#allocation5] sm:$0xff]
        %v1555 = vld [vmem:[#allocation5 + $0x8] sm:$0xff]
        %v1556 = vld [vmem:[#allocation5 + $0x10] sm:$0xff]
        %v1557 = vld [vmem:[#allocation5 + $0x18] sm:$0xff]
        %v1558 = vld [vmem:[#allocation5 + $0x20] sm:$0xff]
        %v1559 = vld [vmem:[#allocation5 + $0x28] sm:$0xff]
        %v1560 = vld [vmem:[#allocation5 + $0x30] sm:$0x3f]
        %v1561 = vld [vmem:[#allocation5 + $0x38] sm:$0x3f]
        %v1562 = vld [vmem:[#allocation5 + $0x40] sm:$0xff]
        %v1563 = vld [vmem:[#allocation5 + $0x48] sm:$0xff]
        %v1564 = vld [vmem:[#allocation5 + $0x50] sm:$0xff]
        %v1565 = vld [vmem:[#allocation5 + $0x58] sm:$0xff]
        %v1566 = vld [vmem:[#allocation5 + $0x60] sm:$0xff]
        %v1567 = vld [vmem:[#allocation5 + $0x68] sm:$0xff]
        %v1568 = vld [vmem:[#allocation5 + $0x70] sm:$0x3f]
        %v1569 = vld [vmem:[#allocation5 + $0x78] sm:$0x3f]
        %v1570 = vld [vmem:[#allocation5 + $0x80] sm:$0xff]
        %v1571 = vld [vmem:[#allocation5 + $0x88] sm:$0xff]
        %v1572 = vld [vmem:[#allocation5 + $0x90] sm:$0xff]
        %v1573 = vld [vmem:[#allocation5 + $0x98] sm:$0xff]
        %v1574 = vld [vmem:[#allocation5 + $0xa0] sm:$0xf]
        %v1575 = vld [vmem:[#allocation5 + $0xa8] sm:$0xf]
        %v1576 = vld [vmem:[#allocation5 + $0xb0] sm:$0xff]
        %v1577 = vld [vmem:[#allocation5 + $0xb8] sm:$0xff]
        %v1578 = vld [vmem:[#allocation5 + $0xc0] sm:$0x3]
        %v1579 = vld [vmem:[#allocation5 + $0xc8] sm:$0x3]
        %v1580 = vld [vmem:[%s215] ss:$8 sm:$0x3]
        %v1582 = vlaneseq
        %v1583 = vshrl.u32 %v1582, 7
        %v1584 = vsub.s32 0, %v1583
        %v1585 = vrot.slane %v1553, %v1584
        %v1586 = vlaneseq
        %v1587 = vshrl.u32 %v1586, 7
        %v1588 = vsub.s32 1, %v1587
        %v1589 = vrot.slane %v1553, %v1588
        %v1592 = vmul.f32 %v1554, %v1585
        %v1593 = vmul.f32 %v1555, %v1589
        %v1594 = vmul.f32 %v1556, %v1585
        %v1595 = vmul.f32 %v1557, %v1589
        %v1596 = vmul.f32 %v1558, %v1585
        %v1597 = vmul.f32 %v1559, %v1589
        %v1598 = vmul.f32 %v1560, %v1585
        %v1599 = vmul.f32 %v1561, %v1589
        %v1600 = vadd.f32 %v1592, %v1562
        %v1601 = vadd.f32 %v1593, %v1563
        %v1602 = vadd.f32 %v1594, %v1564
        %v1603 = vadd.f32 %v1595, %v1565
        %v1604 = vadd.f32 %v1596, %v1566
        %v1605 = vadd.f32 %v1597, %v1567
        %v1606 = vadd.f32 %v1598, %v1568
        %v1607 = vadd.f32 %v1599, %v1569
        %v1608 = vmax.f32 %v1600, 0.0
        %v1609 = vmax.f32 %v1601, 0.0
        %v1610 = vmax.f32 %v1602, 0.0
        %v1611 = vmax.f32 %v1603, 0.0
        %v1612 = vmax.f32 %v1604, 0.0
        %v1613 = vmax.f32 %v1605, 0.0
        %v1614 = vmax.f32 %v1606, 0.0
        %v1615 = vmax.f32 %v1607, 0.0
        %v1616 = vpack.c.bf16 %v1610, %v1608
        %v1617 = vpack.c.bf16 %v1611, %v1609
        %v1618 = vpack.c.bf16 %v1614, %v1612
        %v1619 = vpack.c.bf16 %v1615, %v1613
        %v1621 = vsel %vm263, %v1618, 0
        %v1624 = vsel %vm263, %v1619, 0
        %1626 = vmatprep.subr.bf16.mxu0 %v1617
        %1627 = vmatpush1.bf16.msra.mxu0 %v1616
        %1628 = vmatprep.subr.bf16.mxu0 %v1624
        %1629 = vmatpush1.bf16.msra.mxu0 %v1621
        %1630 = vmatprep.subr.bf16.mxu0 0
        %1631 = vmatpush1.bf16.msra.mxu0 0
        %1632 = vmatprep.subr.bf16.mxu0 0
        %1633 = vmatpush1.bf16.msra.mxu0 0
        %1634 = vmatprep.subr.bf16.mxu0 0
        %1635 = vmatpush1.bf16.msra.mxu0 0
        %1636 = vmatprep.subr.bf16.mxu0 0
        %1637 = vmatpush1.bf16.msra.mxu0 0
        %1638 = vmatprep.subr.bf16.mxu0 0
        %1639 = vmatpush1.bf16.msra.mxu0 0
        %1640 = vmatprep.subr.bf16.mxu0 0
        %1641 = vmatpush1.bf16.msra.mxu0 0
        %1642 = vmatprep.subr.bf16.mxu0 0
        %1643 = vmatpush1.bf16.msra.mxu0 0
        %1644 = vmatprep.subr.bf16.mxu0 0
        %1645 = vmatpush1.bf16.msra.mxu0 0
        %1646 = vmatprep.subr.bf16.mxu0 0
        %1647 = vmatpush1.bf16.msra.mxu0 0
        %1648 = vmatprep.subr.bf16.mxu0 0
        %1649 = vmatpush1.bf16.msra.mxu0 0
        %1650 = vmatprep.subr.bf16.mxu0 0
        %1651 = vmatpush1.bf16.msra.mxu0 0
        %1652 = vmatprep.subr.bf16.mxu0 0
        %1653 = vmatpush1.bf16.msra.mxu0 0
        %1654 = vmatprep.subr.bf16.mxu0 0
        %1655 = vmatpush1.bf16.msra.mxu0 0
        %1656 = vmatprep.subr.bf16.mxu0 0
        %1657 = vmatpush1.bf16.msra.mxu0 0
        %1658 = vmatprep.mubr.bf16.mxu0 0
        %1659 = vmatmul.mubr.bf16.gmra.mrb[0].mxu0 %v258
        %v1660 = vpop.f32.mrb[0].mxu0
        %v1661 = vadd.f32 %v1570, %v1660
        %v1662 = vpop.f32.mrb[0].mxu0
        %v1663 = vadd.f32 %v1571, %v1662
        %v1664 = vpop.f32.mrb[0].mxu0
        %v1665 = vadd.f32 %v1572, %v1664
        %v1666 = vpop.f32.mrb[0].mxu0
        %v1667 = vadd.f32 %v1573, %v1666
        %1668 = vmatprep.mubr.bf16.mxu0 0
        %1669 = vmatmul.mubr.bf16.gmra.mrb[0].mxu0 %v261
        %v1670 = vpop.f32.mrb[0].mxu0
        %v1671 = vadd.f32 %v1574, %v1670
        %v1672 = vpop.f32.mrb[0].mxu0
        %v1673 = vadd.f32 %v1575, %v1672
        %v1674 = vpop.f32.mrb[0].mxu0
        %v1675 = vpop.f32.mrb[0].mxu0
        %1676 = vdwg.mxu0
        %v1677 = vmax.f32 %v1661, 0.0
        %v1678 = vmax.f32 %v1663, 0.0
        %v1679 = vmax.f32 %v1665, 0.0
        %v1680 = vmax.f32 %v1667, 0.0
        %v1681 = vmax.f32 %v1671, 0.0
        %v1682 = vmax.f32 %v1673, 0.0
        %v1683 = vpack.c.bf16 %v1679, %v1677
        %v1684 = vpack.c.bf16 %v1680, %v1678
        %v1685 = vpack.c.bf16 %v1681, %v1681
        %v1686 = vpack.c.bf16 %v1682, %v1682
        %v1688 = vsel %vm335, %v1685, 0
        %v1691 = vsel %vm335, %v1686, 0
        %1693 = vmatprep.subr.bf16.mxu0 %v1684
        %1694 = vmatpush1.bf16.msra.mxu0 %v1683
        %1695 = vmatprep.subr.bf16.mxu0 %v1691
        %1696 = vmatpush1.bf16.msra.mxu0 %v1688
        %1697 = vmatprep.subr.bf16.mxu0 0
        %1698 = vmatpush1.bf16.msra.mxu0 0
        %1699 = vmatprep.subr.bf16.mxu0 0
        %1700 = vmatpush1.bf16.msra.mxu0 0
        %1701 = vmatprep.subr.bf16.mxu0 0
        %1702 = vmatpush1.bf16.msra.mxu0 0
        %1703 = vmatprep.subr.bf16.mxu0 0
        %1704 = vmatpush1.bf16.msra.mxu0 0
        %1705 = vmatprep.subr.bf16.mxu0 0
        %1706 = vmatpush1.bf16.msra.mxu0 0
        %1707 = vmatprep.subr.bf16.mxu0 0
        %1708 = vmatpush1.bf16.msra.mxu0 0
        %1709 = vmatprep.subr.bf16.mxu0 0
        %1710 = vmatpush1.bf16.msra.mxu0 0
        %1711 = vmatprep.subr.bf16.mxu0 0
        %1712 = vmatpush1.bf16.msra.mxu0 0
        %1713 = vmatprep.subr.bf16.mxu0 0
        %1714 = vmatpush1.bf16.msra.mxu0 0
        %1715 = vmatprep.subr.bf16.mxu0 0
        %1716 = vmatpush1.bf16.msra.mxu0 0
        %1717 = vmatprep.subr.bf16.mxu0 0
        %1718 = vmatpush1.bf16.msra.mxu0 0
        %1719 = vmatprep.subr.bf16.mxu0 0
        %1720 = vmatpush1.bf16.msra.mxu0 0
        %1721 = vmatprep.subr.bf16.mxu0 0
        %1722 = vmatpush1.bf16.msra.mxu0 0
        %1723 = vmatprep.subr.bf16.mxu0 0
        %1724 = vmatpush1.bf16.msra.mxu0 0
        %1725 = vmatprep.mubr.bf16.mxu0 0
        %1726 = vmatmul.mubr.bf16.gmra.mrb[0].mxu0 %v333
        %v1727 = vpop.f32.mrb[0].mxu0
        %v1728 = vadd.f32 %v1576, %v1727
        %v1729 = vpop.f32.mrb[0].mxu0
        %v1730 = vadd.f32 %v1577, %v1729
        %v1731 = vpop.f32.mrb[0].mxu0
        %v1732 = vadd.f32 %v1578, %v1731
        %v1733 = vpop.f32.mrb[0].mxu0
        %v1734 = vadd.f32 %v1579, %v1733
        %1735 = vdwg.mxu0
        %v1736 = vmax.f32 %v1728, 0.0
        %v1737 = vmax.f32 %v1730, 0.0
        %v1738 = vmax.f32 %v1732, 0.0
        %v1739 = vmax.f32 %v1734, 0.0
        %v1740 = vpack.c.bf16 %v1738, %v1736
        %v1741 = vpack.c.bf16 %v1739, %v1737
        %v1743 = vlaneseq
        %v1744 = vshrl.u32 %v1743, 7
        %v1745 = vsub.s32 0, %v1744
        %v1746 = vrot.slane %v1580, %v1745
        %v1747 = vlaneseq
        %v1748 = vshrl.u32 %v1747, 7
        %v1749 = vsub.s32 1, %v1748
        %v1750 = vrot.slane %v1580, %v1749
        %v1754 = vsel %vm409, %v1740, 0
        %v1757 = vsel %vm409, %v1741, 0
        %1759 = vmatprep.subr.bf16.mxu0 %v1757
        %1760 = vmatpush1.bf16.msra.mxu0 %v1754
        %1761 = vmatprep.subr.bf16.mxu0 0
        %1762 = vmatpush1.bf16.msra.mxu0 0
        %1763 = vmatprep.subr.bf16.mxu0 0
        %1764 = vmatpush1.bf16.msra.mxu0 0
        %1765 = vmatprep.subr.bf16.mxu0 0
        %1766 = vmatpush1.bf16.msra.mxu0 0
        %1767 = vmatprep.subr.bf16.mxu0 0
        %1768 = vmatpush1.bf16.msra.mxu0 0
        %1769 = vmatprep.subr.bf16.mxu0 0
        %1770 = vmatpush1.bf16.msra.mxu0 0
        %1771 = vmatprep.subr.bf16.mxu0 0
        %1772 = vmatpush1.bf16.msra.mxu0 0
        %1773 = vmatprep.subr.bf16.mxu0 0
        %1774 = vmatpush1.bf16.msra.mxu0 0
        %1775 = vmatprep.subr.bf16.mxu0 0
        %1776 = vmatpush1.bf16.msra.mxu0 0
        %1777 = vmatprep.subr.bf16.mxu0 0
        %1778 = vmatpush1.bf16.msra.mxu0 0
        %1779 = vmatprep.subr.bf16.mxu0 0
        %1780 = vmatpush1.bf16.msra.mxu0 0
        %1781 = vmatprep.subr.bf16.mxu0 0
        %1782 = vmatpush1.bf16.msra.mxu0 0
        %1783 = vmatprep.subr.bf16.mxu0 0
        %1784 = vmatpush1.bf16.msra.mxu0 0
        %1785 = vmatprep.subr.bf16.mxu0 0
        %1786 = vmatpush1.bf16.msra.mxu0 0
        %1787 = vmatprep.subr.bf16.mxu0 0
        %1788 = vmatpush1.bf16.msra.mxu0 0
        %1789 = vmatprep.subr.bf16.mxu0 0
        %1790 = vmatpush1.bf16.msra.mxu0 0
        %1791 = vmatprep.mubr.bf16.mxu0 0
        %1792 = vmatmul.mubr.bf16.gmra.mrb[0].mxu0 %v407
        %v1793 = vpop.f32.mrb[0].mxu0
        %v1794 = vadd.f32 %v1746, %v1793
        %v1795 = vpop.f32.mrb[0].mxu0
        %v1796 = vadd.f32 %v1750, %v1795
        %v1797 = vpop.f32.mrb[0].mxu0
        %v1798 = vpop.f32.mrb[0].mxu0
        %1799 = vdwg.mxu0
        %v1802 = vcombine.low %v1794, %v1796
        %v1804 = vunpack.c.l.s4 1966171168
        %v1805 = vunpack.c.0.s8 %v1804
        %v1806 = vlaneseq
        %v1807 = vshrl.u32 %v1806, 7
        %v1808 = vsub.s32 %v1805, %v1807
        %v1809 = vrot.slane %v1802, %v1808
        %v1811 = vunpack.c.l.s4 1966171168
        %v1812 = vunpack.c.0.s8 %v1811
        %v1813 = vlaneseq
        %v1814 = vshrl.u32 %v1813, 7
        %v1815 = vsub.s32 %v1812, %v1814
        %v1816 = vrot.slane %v1809, %v1815
        %s1818 = scalar_lea.vmem %s174, 10 [#allocation7]
        %1819 = vst.msk [vmem:[%s1818] sm:$0x3] %vm478, %v1816
        %s1820 = scalar_lea.vmem %s150, 12 [#allocation2]
        %v1821 = vld [vmem:[%s1820] sm:$0x3]
        %v1822 = vld [vmem:[#allocation5] sm:$0xff]
        %v1823 = vld [vmem:[#allocation5 + $0x8] sm:$0xff]
        %v1824 = vld [vmem:[#allocation5 + $0x10] sm:$0xff]
        %v1825 = vld [vmem:[#allocation5 + $0x18] sm:$0xff]
        %v1826 = vld [vmem:[#allocation5 + $0x20] sm:$0xff]
        %v1827 = vld [vmem:[#allocation5 + $0x28] sm:$0xff]
        %v1828 = vld [vmem:[#allocation5 + $0x30] sm:$0x3f]
        %v1829 = vld [vmem:[#allocation5 + $0x38] sm:$0x3f]
        %v1830 = vld [vmem:[#allocation5 + $0x40] sm:$0xff]
        %v1831 = vld [vmem:[#allocation5 + $0x48] sm:$0xff]
        %v1832 = vld [vmem:[#allocation5 + $0x50] sm:$0xff]
        %v1833 = vld [vmem:[#allocation5 + $0x58] sm:$0xff]
        %v1834 = vld [vmem:[#allocation5 + $0x60] sm:$0xff]
        %v1835 = vld [vmem:[#allocation5 + $0x68] sm:$0xff]
        %v1836 = vld [vmem:[#allocation5 + $0x70] sm:$0x3f]
        %v1837 = vld [vmem:[#allocation5 + $0x78] sm:$0x3f]
        %v1838 = vld [vmem:[#allocation5 + $0x80] sm:$0xff]
        %v1839 = vld [vmem:[#allocation5 + $0x88] sm:$0xff]
        %v1840 = vld [vmem:[#allocation5 + $0x90] sm:$0xff]
        %v1841 = vld [vmem:[#allocation5 + $0x98] sm:$0xff]
        %v1842 = vld [vmem:[#allocation5 + $0xa0] sm:$0xf]
        %v1843 = vld [vmem:[#allocation5 + $0xa8] sm:$0xf]
        %v1844 = vld [vmem:[#allocation5 + $0xb0] sm:$0xff]
        %v1845 = vld [vmem:[#allocation5 + $0xb8] sm:$0xff]
        %v1846 = vld [vmem:[#allocation5 + $0xc0] sm:$0x3]
        %v1847 = vld [vmem:[#allocation5 + $0xc8] sm:$0x3]
        %v1848 = vld [vmem:[%s215] ss:$8 sm:$0x3]
        %v1850 = vlaneseq
        %v1851 = vshrl.u32 %v1850, 7
        %v1852 = vsub.s32 0, %v1851
        %v1853 = vrot.slane %v1821, %v1852
        %v1854 = vlaneseq
        %v1855 = vshrl.u32 %v1854, 7
        %v1856 = vsub.s32 1, %v1855
        %v1857 = vrot.slane %v1821, %v1856
        %v1860 = vmul.f32 %v1822, %v1853
        %v1861 = vmul.f32 %v1823, %v1857
        %v1862 = vmul.f32 %v1824, %v1853
        %v1863 = vmul.f32 %v1825, %v1857
        %v1864 = vmul.f32 %v1826, %v1853
        %v1865 = vmul.f32 %v1827, %v1857
        %v1866 = vmul.f32 %v1828, %v1853
        %v1867 = vmul.f32 %v1829, %v1857
        %v1868 = vadd.f32 %v1860, %v1830
        %v1869 = vadd.f32 %v1861, %v1831
        %v1870 = vadd.f32 %v1862, %v1832
        %v1871 = vadd.f32 %v1863, %v1833
        %v1872 = vadd.f32 %v1864, %v1834
        %v1873 = vadd.f32 %v1865, %v1835
        %v1874 = vadd.f32 %v1866, %v1836
        %v1875 = vadd.f32 %v1867, %v1837
        %v1876 = vmax.f32 %v1868, 0.0
        %v1877 = vmax.f32 %v1869, 0.0
        %v1878 = vmax.f32 %v1870, 0.0
        %v1879 = vmax.f32 %v1871, 0.0
        %v1880 = vmax.f32 %v1872, 0.0
        %v1881 = vmax.f32 %v1873, 0.0
        %v1882 = vmax.f32 %v1874, 0.0
        %v1883 = vmax.f32 %v1875, 0.0
        %v1884 = vpack.c.bf16 %v1878, %v1876
        %v1885 = vpack.c.bf16 %v1879, %v1877
        %v1886 = vpack.c.bf16 %v1882, %v1880
        %v1887 = vpack.c.bf16 %v1883, %v1881
        %v1889 = vsel %vm263, %v1886, 0
        %v1892 = vsel %vm263, %v1887, 0
        %1894 = vmatprep.subr.bf16.mxu0 %v1885
        %1895 = vmatpush1.bf16.msra.mxu0 %v1884
        %1896 = vmatprep.subr.bf16.mxu0 %v1892
        %1897 = vmatpush1.bf16.msra.mxu0 %v1889
        %1898 = vmatprep.subr.bf16.mxu0 0
        %1899 = vmatpush1.bf16.msra.mxu0 0
        %1900 = vmatprep.subr.bf16.mxu0 0
        %1901 = vmatpush1.bf16.msra.mxu0 0
        %1902 = vmatprep.subr.bf16.mxu0 0
        %1903 = vmatpush1.bf16.msra.mxu0 0
        %1904 = vmatprep.subr.bf16.mxu0 0
        %1905 = vmatpush1.bf16.msra.mxu0 0
        %1906 = vmatprep.subr.bf16.mxu0 0
        %1907 = vmatpush1.bf16.msra.mxu0 0
        %1908 = vmatprep.subr.bf16.mxu0 0
        %1909 = vmatpush1.bf16.msra.mxu0 0
        %1910 = vmatprep.subr.bf16.mxu0 0
        %1911 = vmatpush1.bf16.msra.mxu0 0
        %1912 = vmatprep.subr.bf16.mxu0 0
        %1913 = vmatpush1.bf16.msra.mxu0 0
        %1914 = vmatprep.subr.bf16.mxu0 0
        %1915 = vmatpush1.bf16.msra.mxu0 0
        %1916 = vmatprep.subr.bf16.mxu0 0
        %1917 = vmatpush1.bf16.msra.mxu0 0
        %1918 = vmatprep.subr.bf16.mxu0 0
        %1919 = vmatpush1.bf16.msra.mxu0 0
        %1920 = vmatprep.subr.bf16.mxu0 0
        %1921 = vmatpush1.bf16.msra.mxu0 0
        %1922 = vmatprep.subr.bf16.mxu0 0
        %1923 = vmatpush1.bf16.msra.mxu0 0
        %1924 = vmatprep.subr.bf16.mxu0 0
        %1925 = vmatpush1.bf16.msra.mxu0 0
        %1926 = vmatprep.mubr.bf16.mxu0 0
        %1927 = vmatmul.mubr.bf16.gmra.mrb[0].mxu0 %v258
        %v1928 = vpop.f32.mrb[0].mxu0
        %v1929 = vadd.f32 %v1838, %v1928
        %v1930 = vpop.f32.mrb[0].mxu0
        %v1931 = vadd.f32 %v1839, %v1930
        %v1932 = vpop.f32.mrb[0].mxu0
        %v1933 = vadd.f32 %v1840, %v1932
        %v1934 = vpop.f32.mrb[0].mxu0
        %v1935 = vadd.f32 %v1841, %v1934
        %1936 = vmatprep.mubr.bf16.mxu0 0
        %1937 = vmatmul.mubr.bf16.gmra.mrb[0].mxu0 %v261
        %v1938 = vpop.f32.mrb[0].mxu0
        %v1939 = vadd.f32 %v1842, %v1938
        %v1940 = vpop.f32.mrb[0].mxu0
        %v1941 = vadd.f32 %v1843, %v1940
        %v1942 = vpop.f32.mrb[0].mxu0
        %v1943 = vpop.f32.mrb[0].mxu0
        %1944 = vdwg.mxu0
        %v1945 = vmax.f32 %v1929, 0.0
        %v1946 = vmax.f32 %v1931, 0.0
        %v1947 = vmax.f32 %v1933, 0.0
        %v1948 = vmax.f32 %v1935, 0.0
        %v1949 = vmax.f32 %v1939, 0.0
        %v1950 = vmax.f32 %v1941, 0.0
        %v1951 = vpack.c.bf16 %v1947, %v1945
        %v1952 = vpack.c.bf16 %v1948, %v1946
        %v1953 = vpack.c.bf16 %v1949, %v1949
        %v1954 = vpack.c.bf16 %v1950, %v1950
        %v1956 = vsel %vm335, %v1953, 0
        %v1959 = vsel %vm335, %v1954, 0
        %1961 = vmatprep.subr.bf16.mxu0 %v1952
        %1962 = vmatpush1.bf16.msra.mxu0 %v1951
        %1963 = vmatprep.subr.bf16.mxu0 %v1959
        %1964 = vmatpush1.bf16.msra.mxu0 %v1956
        %1965 = vmatprep.subr.bf16.mxu0 0
        %1966 = vmatpush1.bf16.msra.mxu0 0
        %1967 = vmatprep.subr.bf16.mxu0 0
        %1968 = vmatpush1.bf16.msra.mxu0 0
        %1969 = vmatprep.subr.bf16.mxu0 0
        %1970 = vmatpush1.bf16.msra.mxu0 0
        %1971 = vmatprep.subr.bf16.mxu0 0
        %1972 = vmatpush1.bf16.msra.mxu0 0
        %1973 = vmatprep.subr.bf16.mxu0 0
        %1974 = vmatpush1.bf16.msra.mxu0 0
        %1975 = vmatprep.subr.bf16.mxu0 0
        %1976 = vmatpush1.bf16.msra.mxu0 0
        %1977 = vmatprep.subr.bf16.mxu0 0
        %1978 = vmatpush1.bf16.msra.mxu0 0
        %1979 = vmatprep.subr.bf16.mxu0 0
        %1980 = vmatpush1.bf16.msra.mxu0 0
        %1981 = vmatprep.subr.bf16.mxu0 0
        %1982 = vmatpush1.bf16.msra.mxu0 0
        %1983 = vmatprep.subr.bf16.mxu0 0
        %1984 = vmatpush1.bf16.msra.mxu0 0
        %1985 = vmatprep.subr.bf16.mxu0 0
        %1986 = vmatpush1.bf16.msra.mxu0 0
        %1987 = vmatprep.subr.bf16.mxu0 0
        %1988 = vmatpush1.bf16.msra.mxu0 0
        %1989 = vmatprep.subr.bf16.mxu0 0
        %1990 = vmatpush1.bf16.msra.mxu0 0
        %1991 = vmatprep.subr.bf16.mxu0 0
        %1992 = vmatpush1.bf16.msra.mxu0 0
        %1993 = vmatprep.mubr.bf16.mxu0 0
        %1994 = vmatmul.mubr.bf16.gmra.mrb[0].mxu0 %v333
        %v1995 = vpop.f32.mrb[0].mxu0
        %v1996 = vadd.f32 %v1844, %v1995
        %v1997 = vpop.f32.mrb[0].mxu0
        %v1998 = vadd.f32 %v1845, %v1997
        %v1999 = vpop.f32.mrb[0].mxu0
        %v2000 = vadd.f32 %v1846, %v1999
        %v2001 = vpop.f32.mrb[0].mxu0
        %v2002 = vadd.f32 %v1847, %v2001
        %2003 = vdwg.mxu0
        %v2004 = vmax.f32 %v1996, 0.0
        %v2005 = vmax.f32 %v1998, 0.0
        %v2006 = vmax.f32 %v2000, 0.0
        %v2007 = vmax.f32 %v2002, 0.0
        %v2008 = vpack.c.bf16 %v2006, %v2004
        %v2009 = vpack.c.bf16 %v2007, %v2005
        %v2011 = vlaneseq
        %v2012 = vshrl.u32 %v2011, 7
        %v2013 = vsub.s32 0, %v2012
        %v2014 = vrot.slane %v1848, %v2013
        %v2015 = vlaneseq
        %v2016 = vshrl.u32 %v2015, 7
        %v2017 = vsub.s32 1, %v2016
        %v2018 = vrot.slane %v1848, %v2017
        %v2022 = vsel %vm409, %v2008, 0
        %v2025 = vsel %vm409, %v2009, 0
        %2027 = vmatprep.subr.bf16.mxu0 %v2025
        %2028 = vmatpush1.bf16.msra.mxu0 %v2022
        %2029 = vmatprep.subr.bf16.mxu0 0
        %2030 = vmatpush1.bf16.msra.mxu0 0
        %2031 = vmatprep.subr.bf16.mxu0 0
        %2032 = vmatpush1.bf16.msra.mxu0 0
        %2033 = vmatprep.subr.bf16.mxu0 0
        %2034 = vmatpush1.bf16.msra.mxu0 0
        %2035 = vmatprep.subr.bf16.mxu0 0
        %2036 = vmatpush1.bf16.msra.mxu0 0
        %2037 = vmatprep.subr.bf16.mxu0 0
        %2038 = vmatpush1.bf16.msra.mxu0 0
        %2039 = vmatprep.subr.bf16.mxu0 0
        %2040 = vmatpush1.bf16.msra.mxu0 0
        %2041 = vmatprep.subr.bf16.mxu0 0
        %2042 = vmatpush1.bf16.msra.mxu0 0
        %2043 = vmatprep.subr.bf16.mxu0 0
        %2044 = vmatpush1.bf16.msra.mxu0 0
        %2045 = vmatprep.subr.bf16.mxu0 0
        %2046 = vmatpush1.bf16.msra.mxu0 0
        %2047 = vmatprep.subr.bf16.mxu0 0
        %2048 = vmatpush1.bf16.msra.mxu0 0
        %2049 = vmatprep.subr.bf16.mxu0 0
        %2050 = vmatpush1.bf16.msra.mxu0 0
        %2051 = vmatprep.subr.bf16.mxu0 0
        %2052 = vmatpush1.bf16.msra.mxu0 0
        %2053 = vmatprep.subr.bf16.mxu0 0
        %2054 = vmatpush1.bf16.msra.mxu0 0
        %2055 = vmatprep.subr.bf16.mxu0 0
        %2056 = vmatpush1.bf16.msra.mxu0 0
        %2057 = vmatprep.subr.bf16.mxu0 0
        %2058 = vmatpush1.bf16.msra.mxu0 0
        %2059 = vmatprep.mubr.bf16.mxu0 0
        %2060 = vmatmul.mubr.bf16.gmra.mrb[0].mxu0 %v407
        %v2061 = vpop.f32.mrb[0].mxu0
        %v2062 = vadd.f32 %v2014, %v2061
        %v2063 = vpop.f32.mrb[0].mxu0
        %v2064 = vadd.f32 %v2018, %v2063
        %v2065 = vpop.f32.mrb[0].mxu0
        %v2066 = vpop.f32.mrb[0].mxu0
        %2067 = vdwg.mxu0
        %v2070 = vcombine.low %v2062, %v2064
        %v2072 = vunpack.c.l.s4 1966171168
        %v2073 = vunpack.c.0.s8 %v2072
        %v2074 = vlaneseq
        %v2075 = vshrl.u32 %v2074, 7
        %v2076 = vsub.s32 %v2073, %v2075
        %v2077 = vrot.slane %v2070, %v2076
        %v2079 = vunpack.c.l.s4 1966171168
        %v2080 = vunpack.c.0.s8 %v2079
        %v2081 = vlaneseq
        %v2082 = vshrl.u32 %v2081, 7
        %v2083 = vsub.s32 %v2080, %v2082
        %v2084 = vrot.slane %v2077, %v2083
        %s2086 = scalar_lea.vmem %s174, 12 [#allocation7]
        %2087 = vst.msk [vmem:[%s2086] sm:$0x3] %vm478, %v2084
        %s2088 = scalar_lea.vmem %s150, 14 [#allocation2]
        %v2089 = vld [vmem:[%s2088] sm:$0x3]
        %v2090 = vld [vmem:[#allocation5] sm:$0xff]
        %v2091 = vld [vmem:[#allocation5 + $0x8] sm:$0xff]
        %v2092 = vld [vmem:[#allocation5 + $0x10] sm:$0xff]
        %v2093 = vld [vmem:[#allocation5 + $0x18] sm:$0xff]
        %v2094 = vld [vmem:[#allocation5 + $0x20] sm:$0xff]
        %v2095 = vld [vmem:[#allocation5 + $0x28] sm:$0xff]
        %v2096 = vld [vmem:[#allocation5 + $0x30] sm:$0x3f]
        %v2097 = vld [vmem:[#allocation5 + $0x38] sm:$0x3f]
        %v2098 = vld [vmem:[#allocation5 + $0x40] sm:$0xff]
        %v2099 = vld [vmem:[#allocation5 + $0x48] sm:$0xff]
        %v2100 = vld [vmem:[#allocation5 + $0x50] sm:$0xff]
        %v2101 = vld [vmem:[#allocation5 + $0x58] sm:$0xff]
        %v2102 = vld [vmem:[#allocation5 + $0x60] sm:$0xff]
        %v2103 = vld [vmem:[#allocation5 + $0x68] sm:$0xff]
        %v2104 = vld [vmem:[#allocation5 + $0x70] sm:$0x3f]
        %v2105 = vld [vmem:[#allocation5 + $0x78] sm:$0x3f]
        %v2106 = vld [vmem:[#allocation5 + $0x80] sm:$0xff]
        %v2107 = vld [vmem:[#allocation5 + $0x88] sm:$0xff]
        %v2108 = vld [vmem:[#allocation5 + $0x90] sm:$0xff]
        %v2109 = vld [vmem:[#allocation5 + $0x98] sm:$0xff]
        %v2110 = vld [vmem:[#allocation5 + $0xa0] sm:$0xf]
        %v2111 = vld [vmem:[#allocation5 + $0xa8] sm:$0xf]
        %v2112 = vld [vmem:[#allocation5 + $0xb0] sm:$0xff]
        %v2113 = vld [vmem:[#allocation5 + $0xb8] sm:$0xff]
        %v2114 = vld [vmem:[#allocation5 + $0xc0] sm:$0x3]
        %v2115 = vld [vmem:[#allocation5 + $0xc8] sm:$0x3]
        %v2116 = vld [vmem:[%s215] ss:$8 sm:$0x3]
        %v2118 = vlaneseq
        %v2119 = vshrl.u32 %v2118, 7
        %v2120 = vsub.s32 0, %v2119
        %v2121 = vrot.slane %v2089, %v2120
        %v2122 = vlaneseq
        %v2123 = vshrl.u32 %v2122, 7
        %v2124 = vsub.s32 1, %v2123
        %v2125 = vrot.slane %v2089, %v2124
        %v2128 = vmul.f32 %v2090, %v2121
        %v2129 = vmul.f32 %v2091, %v2125
        %v2130 = vmul.f32 %v2092, %v2121
        %v2131 = vmul.f32 %v2093, %v2125
        %v2132 = vmul.f32 %v2094, %v2121
        %v2133 = vmul.f32 %v2095, %v2125
        %v2134 = vmul.f32 %v2096, %v2121
        %v2135 = vmul.f32 %v2097, %v2125
        %v2136 = vadd.f32 %v2128, %v2098
        %v2137 = vadd.f32 %v2129, %v2099
        %v2138 = vadd.f32 %v2130, %v2100
        %v2139 = vadd.f32 %v2131, %v2101
        %v2140 = vadd.f32 %v2132, %v2102
        %v2141 = vadd.f32 %v2133, %v2103
        %v2142 = vadd.f32 %v2134, %v2104
        %v2143 = vadd.f32 %v2135, %v2105
        %v2144 = vmax.f32 %v2136, 0.0
        %v2145 = vmax.f32 %v2137, 0.0
        %v2146 = vmax.f32 %v2138, 0.0
        %v2147 = vmax.f32 %v2139, 0.0
        %v2148 = vmax.f32 %v2140, 0.0
        %v2149 = vmax.f32 %v2141, 0.0
        %v2150 = vmax.f32 %v2142, 0.0
        %v2151 = vmax.f32 %v2143, 0.0
        %v2152 = vpack.c.bf16 %v2146, %v2144
        %v2153 = vpack.c.bf16 %v2147, %v2145
        %v2154 = vpack.c.bf16 %v2150, %v2148
        %v2155 = vpack.c.bf16 %v2151, %v2149
        %v2157 = vsel %vm263, %v2154, 0
        %v2160 = vsel %vm263, %v2155, 0
        %2162 = vmatprep.subr.bf16.mxu0 %v2153
        %2163 = vmatpush1.bf16.msra.mxu0 %v2152
        %2164 = vmatprep.subr.bf16.mxu0 %v2160
        %2165 = vmatpush1.bf16.msra.mxu0 %v2157
        %2166 = vmatprep.subr.bf16.mxu0 0
        %2167 = vmatpush1.bf16.msra.mxu0 0
        %2168 = vmatprep.subr.bf16.mxu0 0
        %2169 = vmatpush1.bf16.msra.mxu0 0
        %2170 = vmatprep.subr.bf16.mxu0 0
        %2171 = vmatpush1.bf16.msra.mxu0 0
        %2172 = vmatprep.subr.bf16.mxu0 0
        %2173 = vmatpush1.bf16.msra.mxu0 0
        %2174 = vmatprep.subr.bf16.mxu0 0
        %2175 = vmatpush1.bf16.msra.mxu0 0
        %2176 = vmatprep.subr.bf16.mxu0 0
        %2177 = vmatpush1.bf16.msra.mxu0 0
        %2178 = vmatprep.subr.bf16.mxu0 0
        %2179 = vmatpush1.bf16.msra.mxu0 0
        %2180 = vmatprep.subr.bf16.mxu0 0
        %2181 = vmatpush1.bf16.msra.mxu0 0
        %2182 = vmatprep.subr.bf16.mxu0 0
        %2183 = vmatpush1.bf16.msra.mxu0 0
        %2184 = vmatprep.subr.bf16.mxu0 0
        %2185 = vmatpush1.bf16.msra.mxu0 0
        %2186 = vmatprep.subr.bf16.mxu0 0
        %2187 = vmatpush1.bf16.msra.mxu0 0
        %2188 = vmatprep.subr.bf16.mxu0 0
        %2189 = vmatpush1.bf16.msra.mxu0 0
        %2190 = vmatprep.subr.bf16.mxu0 0
        %2191 = vmatpush1.bf16.msra.mxu0 0
        %2192 = vmatprep.subr.bf16.mxu0 0
        %2193 = vmatpush1.bf16.msra.mxu0 0
        %2194 = vmatprep.mubr.bf16.mxu0 0
        %2195 = vmatmul.mubr.bf16.gmra.mrb[0].mxu0 %v258
        %v2196 = vpop.f32.mrb[0].mxu0
        %v2197 = vadd.f32 %v2106, %v2196
        %v2198 = vpop.f32.mrb[0].mxu0
        %v2199 = vadd.f32 %v2107, %v2198
        %v2200 = vpop.f32.mrb[0].mxu0
        %v2201 = vadd.f32 %v2108, %v2200
        %v2202 = vpop.f32.mrb[0].mxu0
        %v2203 = vadd.f32 %v2109, %v2202
        %2204 = vmatprep.mubr.bf16.mxu0 0
        %2205 = vmatmul.mubr.bf16.gmra.mrb[0].mxu0 %v261
        %v2206 = vpop.f32.mrb[0].mxu0
        %v2207 = vadd.f32 %v2110, %v2206
        %v2208 = vpop.f32.mrb[0].mxu0
        %v2209 = vadd.f32 %v2111, %v2208
        %v2210 = vpop.f32.mrb[0].mxu0
        %v2211 = vpop.f32.mrb[0].mxu0
        %2212 = vdwg.mxu0
        %v2213 = vmax.f32 %v2197, 0.0
        %v2214 = vmax.f32 %v2199, 0.0
        %v2215 = vmax.f32 %v2201, 0.0
        %v2216 = vmax.f32 %v2203, 0.0
        %v2217 = vmax.f32 %v2207, 0.0
        %v2218 = vmax.f32 %v2209, 0.0
        %v2219 = vpack.c.bf16 %v2215, %v2213
        %v2220 = vpack.c.bf16 %v2216, %v2214
        %v2221 = vpack.c.bf16 %v2217, %v2217
        %v2222 = vpack.c.bf16 %v2218, %v2218
        %v2224 = vsel %vm335, %v2221, 0
        %v2227 = vsel %vm335, %v2222, 0
        %2229 = vmatprep.subr.bf16.mxu0 %v2220
        %2230 = vmatpush1.bf16.msra.mxu0 %v2219
        %2231 = vmatprep.subr.bf16.mxu0 %v2227
        %2232 = vmatpush1.bf16.msra.mxu0 %v2224
        %2233 = vmatprep.subr.bf16.mxu0 0
        %2234 = vmatpush1.bf16.msra.mxu0 0
        %2235 = vmatprep.subr.bf16.mxu0 0
        %2236 = vmatpush1.bf16.msra.mxu0 0
        %2237 = vmatprep.subr.bf16.mxu0 0
        %2238 = vmatpush1.bf16.msra.mxu0 0
        %2239 = vmatprep.subr.bf16.mxu0 0
        %2240 = vmatpush1.bf16.msra.mxu0 0
        %2241 = vmatprep.subr.bf16.mxu0 0
        %2242 = vmatpush1.bf16.msra.mxu0 0
        %2243 = vmatprep.subr.bf16.mxu0 0
        %2244 = vmatpush1.bf16.msra.mxu0 0
        %2245 = vmatprep.subr.bf16.mxu0 0
        %2246 = vmatpush1.bf16.msra.mxu0 0
        %2247 = vmatprep.subr.bf16.mxu0 0
        %2248 = vmatpush1.bf16.msra.mxu0 0
        %2249 = vmatprep.subr.bf16.mxu0 0
        %2250 = vmatpush1.bf16.msra.mxu0 0
        %2251 = vmatprep.subr.bf16.mxu0 0
        %2252 = vmatpush1.bf16.msra.mxu0 0
        %2253 = vmatprep.subr.bf16.mxu0 0
        %2254 = vmatpush1.bf16.msra.mxu0 0
        %2255 = vmatprep.subr.bf16.mxu0 0
        %2256 = vmatpush1.bf16.msra.mxu0 0
        %2257 = vmatprep.subr.bf16.mxu0 0
        %2258 = vmatpush1.bf16.msra.mxu0 0
        %2259 = vmatprep.subr.bf16.mxu0 0
        %2260 = vmatpush1.bf16.msra.mxu0 0
        %2261 = vmatprep.mubr.bf16.mxu0 0
        %2262 = vmatmul.mubr.bf16.gmra.mrb[0].mxu0 %v333
        %v2263 = vpop.f32.mrb[0].mxu0
        %v2264 = vadd.f32 %v2112, %v2263
        %v2265 = vpop.f32.mrb[0].mxu0
        %v2266 = vadd.f32 %v2113, %v2265
        %v2267 = vpop.f32.mrb[0].mxu0
        %v2268 = vadd.f32 %v2114, %v2267
        %v2269 = vpop.f32.mrb[0].mxu0
        %v2270 = vadd.f32 %v2115, %v2269
        %2271 = vdwg.mxu0
        %v2272 = vmax.f32 %v2264, 0.0
        %v2273 = vmax.f32 %v2266, 0.0
        %v2274 = vmax.f32 %v2268, 0.0
        %v2275 = vmax.f32 %v2270, 0.0
        %v2276 = vpack.c.bf16 %v2274, %v2272
        %v2277 = vpack.c.bf16 %v2275, %v2273
        %v2279 = vlaneseq
        %v2280 = vshrl.u32 %v2279, 7
        %v2281 = vsub.s32 0, %v2280
        %v2282 = vrot.slane %v2116, %v2281
        %v2283 = vlaneseq
        %v2284 = vshrl.u32 %v2283, 7
        %v2285 = vsub.s32 1, %v2284
        %v2286 = vrot.slane %v2116, %v2285
        %v2290 = vsel %vm409, %v2276, 0
        %v2293 = vsel %vm409, %v2277, 0
        %2295 = vmatprep.subr.bf16.mxu0 %v2293
        %2296 = vmatpush1.bf16.msra.mxu0 %v2290
        %2297 = vmatprep.subr.bf16.mxu0 0
        %2298 = vmatpush1.bf16.msra.mxu0 0
        %2299 = vmatprep.subr.bf16.mxu0 0
        %2300 = vmatpush1.bf16.msra.mxu0 0
        %2301 = vmatprep.subr.bf16.mxu0 0
        %2302 = vmatpush1.bf16.msra.mxu0 0
        %2303 = vmatprep.subr.bf16.mxu0 0
        %2304 = vmatpush1.bf16.msra.mxu0 0
        %2305 = vmatprep.subr.bf16.mxu0 0
        %2306 = vmatpush1.bf16.msra.mxu0 0
        %2307 = vmatprep.subr.bf16.mxu0 0
        %2308 = vmatpush1.bf16.msra.mxu0 0
        %2309 = vmatprep.subr.bf16.mxu0 0
        %2310 = vmatpush1.bf16.msra.mxu0 0
        %2311 = vmatprep.subr.bf16.mxu0 0
        %2312 = vmatpush1.bf16.msra.mxu0 0
        %2313 = vmatprep.subr.bf16.mxu0 0
        %2314 = vmatpush1.bf16.msra.mxu0 0
        %2315 = vmatprep.subr.bf16.mxu0 0
        %2316 = vmatpush1.bf16.msra.mxu0 0
        %2317 = vmatprep.subr.bf16.mxu0 0
        %2318 = vmatpush1.bf16.msra.mxu0 0
        %2319 = vmatprep.subr.bf16.mxu0 0
        %2320 = vmatpush1.bf16.msra.mxu0 0
        %2321 = vmatprep.subr.bf16.mxu0 0
        %2322 = vmatpush1.bf16.msra.mxu0 0
        %2323 = vmatprep.subr.bf16.mxu0 0
        %2324 = vmatpush1.bf16.msra.mxu0 0
        %2325 = vmatprep.subr.bf16.mxu0 0
        %2326 = vmatpush1.bf16.msra.mxu0 0
        %2327 = vmatprep.mubr.bf16.mxu0 0
        %2328 = vmatmul.mubr.bf16.gmra.mrb[0].mxu0 %v407
        %v2329 = vpop.f32.mrb[0].mxu0
        %v2330 = vadd.f32 %v2282, %v2329
        %v2331 = vpop.f32.mrb[0].mxu0
        %v2332 = vadd.f32 %v2286, %v2331
        %v2333 = vpop.f32.mrb[0].mxu0
        %v2334 = vpop.f32.mrb[0].mxu0
        %2335 = vdwg.mxu0
        %v2338 = vcombine.low %v2330, %v2332
        %v2340 = vunpack.c.l.s4 1966171168
        %v2341 = vunpack.c.0.s8 %v2340
        %v2342 = vlaneseq
        %v2343 = vshrl.u32 %v2342, 7
        %v2344 = vsub.s32 %v2341, %v2343
        %v2345 = vrot.slane %v2338, %v2344
        %v2347 = vunpack.c.l.s4 1966171168
        %v2348 = vunpack.c.0.s8 %v2347
        %v2349 = vlaneseq
        %v2350 = vshrl.u32 %v2349, 7
        %v2351 = vsub.s32 %v2348, %v2350
        %v2352 = vrot.slane %v2345, %v2351
        %s2354 = scalar_lea.vmem %s174, 14 [#allocation7]
        %2355 = vst.msk [vmem:[%s2354] sm:$0x3] %vm478, %v2352
        %s2356 = sand.u32 %s75, 1
        %s2357 = scalar_lea.sflag [#allocation4], %s2356
        %s2358 = sand.u32 %s75, 1
        %s2359 = smul.addr %s2358, 16
        %s2360 = scalar_lea.vmem [#allocation7], %s2359
        // Predicated region
        $region37: #{deep_option_pricing_forward.1} parent=27 // pred_check
          %p2361 = pneg %p85
        $region38: #{deep_option_pricing_forward.1} parent=27 // pred_check_branch
          %2363 = sbr.rel (%p2361) target = $region40
        $region39: #{deep_option_pricing_forward.1} parent=27 // pred_region
          %s2364 = smul.u32 16, %s20
          %s2366 = ssub.s32 256, 256
          %2367 = vsyncadd %s2357, %s2366
          %s2368 = smul.addr %s2364, 16
          %s2369 = scalar_lea.hbm %s2, %s2368
          %s2371 = sshll.u32 %s2360, 4
          %s2372 = int_to_ptr.vmem [resolvable:$true] %s2371
          %2374 = dma.vmem_to_hbm [thread:$0]  %s2372, 256, %s2369, %s2357
        $region40: #{deep_option_pricing_forward.1} parent=27 // pred_fallthru
          _
      $region28: #{deep_option_pricing_forward.1} parent=5 // pred_fallthru
        _
      %p2375 = scmp.le.s32.totalorder 2, %s15
      // Predicated region
      $region41: #{deep_option_pricing_forward.1} parent=5 // pred_check
        %p2376 = pneg %p2375
      $region42: #{deep_option_pricing_forward.1} parent=5 // pred_check_branch
        %2378 = sbr.rel (%p2376) target = $region44
      $region43: #{deep_option_pricing_forward.1} parent=5 // pred_region
        %s2379 = ssub.s32 %s15, 2
        // Predicated region
        $region45: #{deep_option_pricing_forward.1} parent=43 // pred_check
          %p2380 = pneg %p91
        $region46: #{deep_option_pricing_forward.1} parent=43 // pred_check_branch
          %2382 = sbr.rel (%p2380) target = $region48
        $region47: #{deep_option_pricing_forward.1} parent=43 // pred_region
          %s2383 = sand.u32 %s76, 1
          %s2384 = scalar_lea.sflag [#allocation4], %s2383
          %s2385 = sand.u32 %s76, 1
          %s2386 = smul.addr %s2385, 16
          %s2387 = scalar_lea.vmem [#allocation7], %s2386
          %2388 = dma.done %s2384, 256
        $region48: #{deep_option_pricing_forward.1} parent=43 // pred_fallthru
          _
      $region44: #{deep_option_pricing_forward.1} parent=5 // pred_fallthru
        _
    $region6: #{deep_option_pricing_forward.1} parent=1 // loop_footer
      %s19 = sadd.s32 1, %s15
    $region7: #{deep_option_pricing_forward.1} parent=1 // loop_footer_branch
      %14 = sbr.rel target = $region3
    $region8: #{deep_option_pricing_forward.1} parent=1 // loop_exit
      _
    %2389 = vsyncpa [#allocation3], 1
    %s2390 = scalar_lea.sflag [#allocation3], 1
    %2391 = vsyncpa %s2390, 1
    %2392 = vsyncpa [#allocation6], 1
    %2393 = vsyncpa [#allocation4], 1
    %s2394 = scalar_lea.sflag [#allocation4], 1
    %2395 = vsyncpa %s2394, 1

</llo_original>
